<compile_context>
chip_gen: v7x
topology: tpu7x:2x2x1
jax: 0.10.0
libtpu: 0.0.40
codegen_flags: <defaults>
</compile_context>

<pallas_src>
import jax
import jax.numpy as jnp
from jax.experimental import pallas as pl
from jax.experimental.pallas import tpu as pltpu

# ----------------------------- model configuration (small, synthetic) -----------------------------
B = 2            # batch size
N_LAYERS = 4     # len(cfg.MODEL.BACKBONE.LAYERS)
H = W = 16       # backbone patch grid (feature-map spatial size)
HW = H * W
PATCH = 2        # stand-in patch size for the synthetic backbone
IMG = H * PATCH  # input image spatial size (32)

C_CONV = 32      # cfg.MODEL.CONV_HEAD.WIDTH          (x_retina / x_cls channel dim)
D_SMALL = 16     # cfg.MODEL.BACKBONE_SMALL.WIDTH     (x_cls_prev dim)
D_MERGE = 16     # cfg.MODEL.BACKBONE_SMALL.MERGE_WIDTH (x_p dim)
D_PT = 8         # cfg.MODEL.COND.PASSTHROUGH_DIM     (c_pt0 / c_pt1 dim)
D_TAIL = D_SMALL + D_MERGE + 2 * D_PT                 # 48
D_MODEL = C_CONV + D_TAIL                              # 80

IN_DIM = 3       # cfg.POSITION_ENCODING.IN_DIM (voxel coordinates)
HID = 32         # hidden width of the coords MLPs
MU_SIGMA = 0.1   # cfg.MODEL.RETINA_MAPPER.CONSTANT_SIGMA

D_BHV = 8        # behavior vector dim
T_PREV = 3       # number of previous frames/features
D_PF = 16        # previous-feature dim

N_VOX = 1024     # number of voxels for the single subject (4 grid steps -> >=2 per v7x core)
TN = 256         # voxel tile (replaces torch.split chunking); keeps M/N 256-aligned for the MXU

SUBJECT = "subj01"


# ---------------------------------------- Pallas kernel ----------------------------------------
def _voxel_kernel(coords_ref,            # (IN_DIM, TN)               voxel coords, voxels on lanes
                  w1_ref, b1_ref,        # (2*HID, IN_DIM), (2*HID,1) fused first layer (ls|rm)
                  lsw2_ref, lsb2_ref,    # (L, HID), (L, 1)           layer_selector head
                  rmw2_ref, rmb2_ref,    # (2, HID), (2, 1)           retina_mapper head
                  feat_ref,              # (B*L*C, HW) bf16           all conv feature maps
                  cls_ref,               # (B, C, L)  f32             cls tokens
                  wconv_ref,             # (C, TN) f32                per-voxel conv readout w^T
                  add_ref,               # (B, TN) f32                precomputed tail/d + bias
                  out_ref):              # (B, TN) f32                lane-dense output tile
    coords = coords_ref[...]                                                   # (3, TN)
    w1 = w1_ref[...]                                                           # (2*HID, 3)

    # ---- fused first layer of both coords MLPs as VPU outer-product FMAs (no K=3 MXU push) ---
    acc1 = w1[:, 0:1] * coords[0:1, :]
    for d in range(1, IN_DIM):
        acc1 = acc1 + w1[:, d:d + 1] * coords[d:d + 1, :]
    h = jnp.maximum(acc1 + b1_ref[...], 0.0)                                   # (2*HID, TN)
    h_ls = h[:HID, :]
    h_rm = h[HID:, :]

    # ---- layer_selector[subject](coords): softmax over layers (EUP exp / approx reciprocal) --
    logits = jnp.dot(lsw2_ref[...], h_ls, preferred_element_type=jnp.float32) + lsb2_ref[...]
    m = jnp.max(logits, axis=0, keepdims=True)
    el = jnp.exp(logits - m)
    w_layer = el * pl.reciprocal(jnp.sum(el, axis=0, keepdims=True), approx=True)   # (L, TN)

    # ---- retina_mapper[subject](coords): tanh (EUP), scaled by (1 - mu_sigma) ----------------
    mu = jnp.tanh(jnp.dot(rmw2_ref[...], h_rm, preferred_element_type=jnp.float32)
                  + rmb2_ref[...]) * (1.0 - MU_SIGMA)                          # (2, TN): x, y

    # ---- separable bilinear grid_sample matrix S^T (HW, TN), padding_mode='zeros' ------------
    gx = mu[0:1, :]
    gy = mu[1:2, :]
    ix = ((gx + 1.0) * W - 1.0) * 0.5
    iy = ((gy + 1.0) * H - 1.0) * 0.5
    ix0f = jnp.floor(ix)
    iy0f = jnp.floor(iy)
    wx1 = ix - ix0f
    wx0 = 1.0 - wx1
    wy1 = iy - iy0f
    wy0 = 1.0 - wy1
    ix0 = ix0f.astype(jnp.int32)
    iy0 = iy0f.astype(jnp.int32)

    # small 1-D iota compares: Sx^T (W, TN) and Sy^T (H, TN) are only 4 vregs each.
    # OOB corner indices (<0 or >=W/H) never match the in-range iota -> weight 0 (zero padding).
    wi = jax.lax.broadcasted_iota(jnp.int32, (W, TN), 0)
    hi = jax.lax.broadcasted_iota(jnp.int32, (H, TN), 0)
    sx = jnp.where(wi == ix0, wx0, 0.0) + jnp.where(wi == ix0 + 1, wx1, 0.0)   # (W, TN)
    sy = jnp.where(hi == iy0, wy0, 0.0) + jnp.where(hi == iy0 + 1, wy1, 0.0)   # (H, TN)

    # outer product over pixels, reshape (H, W, TN) -> (HW, TN) is a free sublane-merge, one cast
    sy_e = jax.lax.broadcast_in_dim(sy, (H, W, TN), (0, 2))
    sx_e = jax.lax.broadcast_in_dim(sx, (H, W, TN), (1, 2))
    s_bf = (sy_e * sx_e).reshape(HW, TN).astype(jnp.bfloat16)                  # (HW, TN) bf16

    # ---- per-(batch, layer) MXU matmuls with immediate layer mixing (no (B*L*C, TN) spill) ---
    wl_rows = [w_layer[l:l + 1, :] for l in range(N_LAYERS)]                   # hoisted slices
    w_conv = wconv_ref[...]                                                    # (C, TN)
    rows = []
    for b in range(B):
        # cls mixing as a tiny matmul: (C, L) @ (L, TN)
        acc = jnp.dot(cls_ref[b], w_layer, preferred_element_type=jnp.float32)  # (C, TN)
        for l in range(N_LAYERS):
            r0 = (b * N_LAYERS + l) * C_CONV
            g_bl = jnp.dot(feat_ref[r0:r0 + C_CONV, :], s_bf,
                           preferred_element_type=jnp.float32)                  # (C, TN) f32
            acc = acc + wl_rows[l] * g_bl
        rows.append(jnp.sum(acc * w_conv, axis=0, keepdims=True))              # (1, TN) XLU reduce
    main = jnp.concatenate(rows, axis=0)                                       # (B, TN)

    # tail readout + bias were folded into add_ref in the wrapper (already divided by d_model)
    out_ref[...] = main * (1.0 / D_MODEL) + add_ref[...]


# ----------------------------------------- wrapper ---------------------------------------------
def _simulate_features(x, bhv, prev_img, prev_feats, prev_bhvs, params):
    # TODO(synk): behav_embed / AdaLNLoRADiNOv2ViT backbone / conv_blocks / cls_blocks /
    # behav_pt / backbone_prev / time_emb / prev_feat_embed / prev_compress are external,
    # unspecified builders in the reference code; they are replaced by deterministic plain-JAX
    # projections that produce tensors with the shapes consumed by the voxel-wise Pallas kernel.
    b = x.shape[0]
    patches = x.reshape(b, 3, H, PATCH, W, PATCH)
    patches = patches.transpose(0, 2, 4, 1, 3, 5).reshape(b, HW, 3 * PATCH * PATCH)
    feat = jnp.stack([jnp.tanh(patches @ params["patch_proj"][l]) for l in range(N_LAYERS)], 0)
    cls_ = jnp.stack([jnp.tanh(patches.mean(1) @ params["cls_proj"][l]) for l in range(N_LAYERS)], 0)
    x_cls_prev = jnp.tanh(prev_img.reshape(b, -1) @ params["prev_proj"]
                          + prev_bhvs[:, 0, :] @ params["prevb_proj"])        # (B, D_SMALL)
    x_p = jnp.tanh(prev_feats.mean(axis=1) @ params["pf_proj"])               # (B, D_MERGE)
    c_pt0 = bhv @ params["pt0_proj"]                                          # (B, D_PT)
    c_pt1 = prev_bhvs[:, 0, :] @ params["pt1_proj"]                           # (B, D_PT)
    return feat, cls_, x_cls_prev, x_p, c_pt0, c_pt1


def mem_voxelwise_forward(x, subject, coords, bhv, prev_img, prev_feats, prev_bhvs, params):
    feat, cls_, clsprev, xpf, cpt0, cpt1 = _simulate_features(
        x, bhv, prev_img, prev_feats, prev_bhvs, params)
    sp = params["subjects"][subject]
    n_vox = coords.shape[0]

    # ---- pad to a TN multiple so the kernel keeps lane-dense, unmasked stores -----------------
    n_pad = ((n_vox + TN - 1) // TN) * TN
    w_vox, b_vox = sp["w_vox"], sp["b_vox"]
    if n_pad != n_vox:
        pad = n_pad - n_vox
        coords = jnp.pad(coords, ((0, pad), (0, 0)))
        w_vox = jnp.pad(w_vox, ((0, pad), (0, 0)))
        b_vox = jnp.pad(b_vox, ((0, pad), (0, 0)))

    # ---- one-time layout plumbing in the wrapper (lane-dense, voxels-on-lanes kernel inputs) --
    coords_t = coords.T                                                        # (IN_DIM, N)
    # feat2dT rows ordered (b, l, c); channels-major so each (b, l) grid_sample is one matmul
    # against the shared S^T.  bf16 halves DMA/VMEM and gives full-rate MXU passes (f32 acc).
    feat2d_t = feat.transpose(1, 0, 3, 2).reshape(B * N_LAYERS * C_CONV, HW).astype(jnp.bfloat16)
    cls_bt = cls_.transpose(1, 2, 0)                                           # (B, C, L)
    w1cat_t = jnp.concatenate([sp["ls_w1"], sp["rm_w1"]], axis=1).T            # (2*HID, IN_DIM)
    b1cat_t = jnp.concatenate([sp["ls_b1"], sp["rm_b1"]], axis=1).T            # (2*HID, 1)
    ls_w2_t = sp["ls_w2"].T                                                    # (L, HID)
    ls_b2_t = sp["ls_b2"].T                                                    # (L, 1)
    rm_w2_t = sp["rm_w2"].T                                                    # (2, HID)
    rm_b2_t = sp["rm_b2"].T                                                    # (2, 1)
    # w_conv stays f32 for bit-for-bit-ish accuracy of the per-voxel readout; at production
    # voxel counts on v5e it can be cast to bf16 here to halve its per-tile DMA.
    w_conv_t = w_vox[:, :C_CONV].T                                             # (C, N)

    # Precompute the broadcast-tail readout + bias outside the kernel (one tiny XLA matmul);
    # pass it as a single (B, TN)-tiled additive input.  Already divided by d_model.
    bcast = jnp.concatenate([clsprev, xpf, cpt0, cpt1], axis=-1)               # (B, D_TAIL)
    add_bn = (bcast @ w_vox[:, C_CONV:].T) * (1.0 / D_MODEL) + b_vox[:, 0][None, :]  # (B, N)

    def full(*shape):
        # grid-invariant inputs (constant index_map).  At production feature-map sizes these
        # should additionally be single-buffered (pipeline_mode=pl.Buffered(1)); at demo sizes
        # the double-buffered copies total < 300 KiB so it is left to the default here.
        return pl.BlockSpec(shape, lambda i, _n=len(shape): (0,) * _n)

    out = pl.pallas_call(
        _voxel_kernel,
        out_shape=jax.ShapeDtypeStruct((B, n_pad), jnp.float32),
        grid=(n_pad // TN,),
        in_specs=[
            pl.BlockSpec((IN_DIM, TN), lambda i: (0, i)),            # coords tile (voxels on lanes)
            full(2 * HID, IN_DIM), full(2 * HID, 1),                 # fused coords-MLP layer 1
            full(N_LAYERS, HID), full(N_LAYERS, 1),                  # layer_selector head
            full(2, HID), full(2, 1),                                # retina_mapper head
            full(B * N_LAYERS * C_CONV, HW),                         # stacked conv features (bf16)
            full(B, C_CONV, N_LAYERS),                               # cls tokens
            pl.BlockSpec((C_CONV, TN), lambda i: (0, i)),            # per-voxel conv readout w^T
            pl.BlockSpec((B, TN), lambda i: (0, i)),                 # precomputed tail/d + bias
        ],
        out_specs=pl.BlockSpec((B, TN), lambda i: (0, i)),           # lane-dense (B, TN) output
        compiler_params=pltpu.CompilerParams(
            dimension_semantics=("parallel",),
            vmem_limit_bytes=32 * 1024 * 1024),
    )(coords_t, w1cat_t, b1cat_t, ls_w2_t, ls_b2_t, rm_w2_t, rm_b2_t,
      feat2d_t, cls_bt, w_conv_t, add_bn)
    return out[:, :n_vox]                                            # (B, n_voxels), no transpose


# -------------------------------- pure-JAX reference (for checking) ----------------------------
def _reference_voxels(coords, sp, feat, cls_, clsprev, xpf, cpt0, cpt1):
    h = jnp.maximum(coords @ sp["ls_w1"] + sp["ls_b1"], 0.0)
    w_layer = jax.nn.softmax(h @ sp["ls_w2"] + sp["ls_b2"], axis=-1)          # (N, L)
    hr = jnp.maximum(coords @ sp["rm_w1"] + sp["rm_b1"], 0.0)
    mu = jnp.tanh(hr @ sp["rm_w2"] + sp["rm_b2"]) * (1.0 - MU_SIGMA)          # (N, 2)

    gx, gy = mu[:, 0], mu[:, 1]
    ix = ((gx + 1.0) * W - 1.0) * 0.5
    iy = ((gy + 1.0) * H - 1.0) * 0.5
    ix0 = jnp.floor(ix).astype(jnp.int32)
    iy0 = jnp.floor(iy).astype(jnp.int32)
    wx1 = ix - ix0
    wx0 = 1.0 - wx1
    wy1 = iy - iy0
    wy0 = 1.0 - wy1

    def gather(ixc, iyc, wgt):
        inb = ((ixc >= 0) & (ixc < W) & (iyc >= 0) & (iyc < H)).astype(jnp.float32)
        idx = jnp.clip(iyc, 0, H - 1) * W + jnp.clip(ixc, 0, W - 1)
        v = feat[:, :, idx, :]                                                # (L, B, N, C)
        return v * (inb * wgt)[None, None, :, None]

    samp = (gather(ix0, iy0, wx0 * wy0) + gather(ix0 + 1, iy0, wx1 * wy0)
            + gather(ix0, iy0 + 1, wx0 * wy1) + gather(ix0 + 1, iy0 + 1, wx1 * wy1))
    x_retina = jnp.einsum('nl,lbnc->bnc', w_layer, samp)
    x_cls_w = jnp.einsum('nl,lbc->bnc', w_layer, cls_)
    xy = x_retina + x_cls_w                                                   # (B, N, C)

    wvox, bvox = sp["w_vox"], sp["b_vox"]
    main = jnp.einsum('bnc,nc->bn', xy, wvox[:, :C_CONV])
    off = C_CONV
    main += jnp.einsum('bd,nd->bn', clsprev, wvox[:, off:off + D_SMALL]); off += D_SMALL
    main += jnp.einsum('bd,nd->bn', xpf, wvox[:, off:off + D_MERGE]); off += D_MERGE
    main += jnp.einsum('bd,nd->bn', cpt0, wvox[:, off:off + D_PT]); off += D_PT
    main += jnp.einsum('bd,nd->bn', cpt1, wvox[:, off:off + D_PT])
    return main / D_MODEL + bvox[:, 0][None, :]                               # (B, N)


# --------------------------------------- parameter init ----------------------------------------
def init_params(key):
    keys = iter(jax.random.split(key, 64))

    def nrm(shape, scale=0.1):
        return (scale * jax.random.normal(next(keys), shape)).astype(jnp.float32)

    params = {
        "patch_proj": nrm((N_LAYERS, 3 * PATCH * PATCH, C_CONV)),
        "cls_proj":   nrm((N_LAYERS, 3 * PATCH * PATCH, C_CONV)),
        "prev_proj":  nrm((3 * IMG * IMG, D_SMALL), scale=0.02),
        "prevb_proj": nrm((D_BHV, D_SMALL)),
        "pf_proj":    nrm((D_PF, D_MERGE)),
        "pt0_proj":   nrm((D_BHV, D_PT)),
        "pt1_proj":   nrm((D_BHV, D_PT)),
        "subjects": {
            SUBJECT: {
                # TODO(synk): CachedCoordsMLP architecture is not specified; using a 2-layer
                # ReLU MLP with the documented in/out dims and activation (softmax / tanh).
                "ls_w1": nrm((IN_DIM, HID)), "ls_b1": nrm((1, HID)),
                "ls_w2": nrm((HID, N_LAYERS)), "ls_b2": nrm((1, N_LAYERS)),
                "rm_w1": nrm((IN_DIM, HID)), "rm_b1": nrm((1, HID)),
                "rm_w2": nrm((HID, 2)), "rm_b2": nrm((1, 2)),
                # VoxelNonShareLinearWeight variant: direct per-voxel (w, b) parameters.
                "w_vox": nrm((N_VOX, D_MODEL)), "b_vox": nrm((N_VOX, 1)),
            }
        },
    }
    return params


# -------------------------------------------- main ---------------------------------------------
if __name__ == "__main__":
    key = jax.random.PRNGKey(0)
    k_p, k_x, k_b, k_pi, k_pf, k_pb, k_c = jax.random.split(key, 7)

    params = init_params(k_p)
    x = jax.random.normal(k_x, (B, 3, IMG, IMG), dtype=jnp.float32)
    bhv = jax.random.normal(k_b, (B, D_BHV), dtype=jnp.float32)
    prev_img = jax.random.normal(k_pi, (B, 3, IMG, IMG), dtype=jnp.float32)
    prev_feats = jax.random.normal(k_pf, (B, T_PREV, D_PF), dtype=jnp.float32)
    prev_bhvs = jax.random.normal(k_pb, (B, T_PREV + 1, D_BHV), dtype=jnp.float32)
    coords = jax.random.uniform(k_c, (N_VOX, IN_DIM), minval=-1.0, maxval=1.0, dtype=jnp.float32)

    out = mem_voxelwise_forward(x, SUBJECT, coords, bhv, prev_img, prev_feats, prev_bhvs, params)
    out = jax.block_until_ready(out)
    assert out.shape == (B, N_VOX), out.shape

    # correctness check against a pure-JAX reference of _forward_voxels (eval path).
    # tolerance 2e-3: the kernel runs the grid-sample matmuls with bf16 inputs (f32 accumulate)
    # and an approx softmax reciprocal, which add ~1e-4 worst-case error after the /d_model mean.
    feat, cls_, clsprev, xpf, cpt0, cpt1 = _simulate_features(
        x, bhv, prev_img, prev_feats, prev_bhvs, params)
    ref = _reference_voxels(coords, params["subjects"][SUBJECT],
                            feat, cls_, clsprev, xpf, cpt0, cpt1)
    max_err = float(jnp.max(jnp.abs(out - ref)))
    assert max_err < 2e-3, f"mismatch vs reference: {max_err}"

    print("KERNEL_OK")
</pallas_src>

<mosaic_0001>
module attributes {stable_mosaic.version = 11 : i64} {
  func.func @_voxel_kernel(%arg0: i32, %arg1: memref<3x256xf32, #tpu.memory_space<vmem>>, %arg2: memref<64x3xf32, #tpu.memory_space<vmem>>, %arg3: memref<64x1xf32, #tpu.memory_space<vmem>>, %arg4: memref<4x32xf32, #tpu.memory_space<vmem>>, %arg5: memref<4x1xf32, #tpu.memory_space<vmem>>, %arg6: memref<2x32xf32, #tpu.memory_space<vmem>>, %arg7: memref<2x1xf32, #tpu.memory_space<vmem>>, %arg8: memref<256x256xbf16, #tpu.memory_space<vmem>>, %arg9: memref<2x32x4xf32, #tpu.memory_space<vmem>>, %arg10: memref<32x256xf32, #tpu.memory_space<vmem>>, %arg11: memref<2x256xf32, #tpu.memory_space<vmem>>, %arg12: memref<2x256xf32, #tpu.memory_space<vmem>>) attributes {dimension_semantics = [#tpu.dimension_semantics<parallel>], iteration_bounds = array<i64: 4>, scalar_prefetch = 0 : i64, scratch_operands = 0 : i64, tpu.core_type = #tpu.core_type<tc>, window_params = [{transform_indices = @transform_0, window_bounds = array<i64: 3, 256>}, {pipeline_mode = #tpu.pipeline_mode<synchronous>, transform_indices = @transform_1, window_bounds = array<i64: 64, 3>}, {pipeline_mode = #tpu.pipeline_mode<synchronous>, transform_indices = @transform_2, window_bounds = array<i64: 64, 1>}, {pipeline_mode = #tpu.pipeline_mode<synchronous>, transform_indices = @transform_3, window_bounds = array<i64: 4, 32>}, {pipeline_mode = #tpu.pipeline_mode<synchronous>, transform_indices = @transform_4, window_bounds = array<i64: 4, 1>}, {pipeline_mode = #tpu.pipeline_mode<synchronous>, transform_indices = @transform_5, window_bounds = array<i64: 2, 32>}, {pipeline_mode = #tpu.pipeline_mode<synchronous>, transform_indices = @transform_6, window_bounds = array<i64: 2, 1>}, {pipeline_mode = #tpu.pipeline_mode<synchronous>, transform_indices = @transform_7, window_bounds = array<i64: 256, 256>}, {pipeline_mode = #tpu.pipeline_mode<synchronous>, transform_indices = @transform_8, window_bounds = array<i64: 2, 32, 4>}, {transform_indices = @transform_9, window_bounds = array<i64: 32, 256>}, {transform_indices = @transform_10, window_bounds = array<i64: 2, 256>}, {transform_indices = @transform_11, window_bounds = array<i64: 2, 256>}]} {
    %c0 = arith.constant 0 : index
    %c0_0 = arith.constant 0 : index
    %0 = vector.load %arg1[%c0, %c0_0] : memref<3x256xf32, #tpu.memory_space<vmem>>, vector<3x256xf32>
    %c0_1 = arith.constant 0 : index
    %c0_2 = arith.constant 0 : index
    %1 = vector.load %arg2[%c0_1, %c0_2] : memref<64x3xf32, #tpu.memory_space<vmem>>, vector<64x3xf32>
    %2 = vector.extract_strided_slice %1 {offsets = [0, 0], sizes = [64, 1], strides = [1, 1]} : vector<64x3xf32> to vector<64x1xf32>
    %3 = vector.extract_strided_slice %0 {offsets = [0, 0], sizes = [1, 256], strides = [1, 1]} : vector<3x256xf32> to vector<1x256xf32>
    %4 = vector.broadcast %2 : vector<64x1xf32> to vector<64x256xf32>
    %5 = vector.broadcast %3 : vector<1x256xf32> to vector<64x256xf32>
    %6 = arith.mulf %4, %5 : vector<64x256xf32>
    %7 = vector.extract_strided_slice %1 {offsets = [0, 1], sizes = [64, 1], strides = [1, 1]} : vector<64x3xf32> to vector<64x1xf32>
    %8 = vector.extract_strided_slice %0 {offsets = [1, 0], sizes = [1, 256], strides = [1, 1]} : vector<3x256xf32> to vector<1x256xf32>
    %9 = vector.broadcast %7 : vector<64x1xf32> to vector<64x256xf32>
    %10 = vector.broadcast %8 : vector<1x256xf32> to vector<64x256xf32>
    %11 = arith.mulf %9, %10 : vector<64x256xf32>
    %12 = arith.addf %6, %11 : vector<64x256xf32>
    %13 = vector.extract_strided_slice %1 {offsets = [0, 2], sizes = [64, 1], strides = [1, 1]} : vector<64x3xf32> to vector<64x1xf32>
    %14 = vector.extract_strided_slice %0 {offsets = [2, 0], sizes = [1, 256], strides = [1, 1]} : vector<3x256xf32> to vector<1x256xf32>
    %15 = vector.broadcast %13 : vector<64x1xf32> to vector<64x256xf32>
    %16 = vector.broadcast %14 : vector<1x256xf32> to vector<64x256xf32>
    %17 = arith.mulf %15, %16 : vector<64x256xf32>
    %18 = arith.addf %12, %17 : vector<64x256xf32>
    %c0_3 = arith.constant 0 : index
    %c0_4 = arith.constant 0 : index
    %19 = vector.load %arg3[%c0_3, %c0_4] : memref<64x1xf32, #tpu.memory_space<vmem>>, vector<64x1xf32>
    %20 = vector.broadcast %19 : vector<64x1xf32> to vector<64x256xf32>
    %21 = arith.addf %18, %20 : vector<64x256xf32>
    %cst = arith.constant 0.000000e+00 : f32
    %22 = vector.broadcast %cst : f32 to vector<64x256xf32>
    %23 = arith.maximumf %21, %22 : vector<64x256xf32>
    %24 = vector.extract_strided_slice %23 {offsets = [0, 0], sizes = [32, 256], strides = [1, 1]} : vector<64x256xf32> to vector<32x256xf32>
    %25 = vector.extract_strided_slice %23 {offsets = [32, 0], sizes = [32, 256], strides = [1, 1]} : vector<64x256xf32> to vector<32x256xf32>
    %c0_5 = arith.constant 0 : index
    %c0_6 = arith.constant 0 : index
    %26 = vector.load %arg4[%c0_5, %c0_6] : memref<4x32xf32, #tpu.memory_space<vmem>>, vector<4x32xf32>
    %cst_7 = arith.constant dense<0.000000e+00> : vector<4x256xf32>
    %27 = tpu.matmul %26, %24, %cst_7 {dimension_numbers = #tpu.dot_dimension_numbers<[1], [0], [0], [1], [0, 0, 1, 1], [], []>} : vector<4x32xf32>, vector<32x256xf32>, vector<4x256xf32> -> vector<4x256xf32>
    %c0_8 = arith.constant 0 : index
    %c0_9 = arith.constant 0 : index
    %28 = vector.load %arg5[%c0_8, %c0_9] : memref<4x1xf32, #tpu.memory_space<vmem>>, vector<4x1xf32>
    %29 = vector.broadcast %28 : vector<4x1xf32> to vector<4x256xf32>
    %30 = arith.addf %27, %29 : vector<4x256xf32>
    %cst_10 = arith.constant dense<0xFF800000> : vector<256xf32>
    %31 = vector.multi_reduction <maximumf>, %30, %cst_10 [0] : vector<4x256xf32> to vector<256xf32>
    %32 = vector.shape_cast %31 : vector<256xf32> to vector<1x256xf32>
    %33 = vector.broadcast %32 : vector<1x256xf32> to vector<4x256xf32>
    %34 = arith.subf %30, %33 : vector<4x256xf32>
    %35 = math.exp %34 : vector<4x256xf32>
    %cst_11 = arith.constant dense<0.000000e+00> : vector<256xf32>
    %36 = vector.multi_reduction <add>, %35, %cst_11 [0] : vector<4x256xf32> to vector<256xf32>
    %37 = vector.shape_cast %36 : vector<256xf32> to vector<1x256xf32>
    %38 = tpu.reciprocal %37 {approx = true} : vector<1x256xf32> -> vector<1x256xf32>
    %39 = vector.broadcast %38 : vector<1x256xf32> to vector<4x256xf32>
    %40 = arith.mulf %35, %39 : vector<4x256xf32>
    %c0_12 = arith.constant 0 : index
    %c0_13 = arith.constant 0 : index
    %41 = vector.load %arg6[%c0_12, %c0_13] : memref<2x32xf32, #tpu.memory_space<vmem>>, vector<2x32xf32>
    %cst_14 = arith.constant dense<0.000000e+00> : vector<2x256xf32>
    %42 = tpu.matmul %41, %25, %cst_14 {dimension_numbers = #tpu.dot_dimension_numbers<[1], [0], [0], [1], [0, 0, 1, 1], [], []>} : vector<2x32xf32>, vector<32x256xf32>, vector<2x256xf32> -> vector<2x256xf32>
    %c0_15 = arith.constant 0 : index
    %c0_16 = arith.constant 0 : index
    %43 = vector.load %arg7[%c0_15, %c0_16] : memref<2x1xf32, #tpu.memory_space<vmem>>, vector<2x1xf32>
    %44 = vector.broadcast %43 : vector<2x1xf32> to vector<2x256xf32>
    %45 = arith.addf %42, %44 : vector<2x256xf32>
    %46 = math.tanh %45 : vector<2x256xf32>
    %cst_17 = arith.constant 0.899999976 : f32
    %47 = vector.broadcast %cst_17 : f32 to vector<2x256xf32>
    %48 = arith.mulf %46, %47 : vector<2x256xf32>
    %49 = vector.extract_strided_slice %48 {offsets = [0, 0], sizes = [1, 256], strides = [1, 1]} : vector<2x256xf32> to vector<1x256xf32>
    %50 = vector.extract_strided_slice %48 {offsets = [1, 0], sizes = [1, 256], strides = [1, 1]} : vector<2x256xf32> to vector<1x256xf32>
    %cst_18 = arith.constant 1.000000e+00 : f32
    %51 = vector.broadcast %cst_18 : f32 to vector<1x256xf32>
    %52 = arith.addf %49, %51 : vector<1x256xf32>
    %cst_19 = arith.constant 1.600000e+01 : f32
    %53 = vector.broadcast %cst_19 : f32 to vector<1x256xf32>
    %54 = arith.mulf %52, %53 : vector<1x256xf32>
    %cst_20 = arith.constant 1.000000e+00 : f32
    %55 = vector.broadcast %cst_20 : f32 to vector<1x256xf32>
    %56 = arith.subf %54, %55 : vector<1x256xf32>
    %cst_21 = arith.constant 5.000000e-01 : f32
    %57 = vector.broadcast %cst_21 : f32 to vector<1x256xf32>
    %58 = arith.mulf %56, %57 : vector<1x256xf32>
    %cst_22 = arith.constant 1.000000e+00 : f32
    %59 = vector.broadcast %cst_22 : f32 to vector<1x256xf32>
    %60 = arith.addf %50, %59 : vector<1x256xf32>
    %cst_23 = arith.constant 1.600000e+01 : f32
    %61 = vector.broadcast %cst_23 : f32 to vector<1x256xf32>
    %62 = arith.mulf %60, %61 : vector<1x256xf32>
    %cst_24 = arith.constant 1.000000e+00 : f32
    %63 = vector.broadcast %cst_24 : f32 to vector<1x256xf32>
    %64 = arith.subf %62, %63 : vector<1x256xf32>
    %cst_25 = arith.constant 5.000000e-01 : f32
    %65 = vector.broadcast %cst_25 : f32 to vector<1x256xf32>
    %66 = arith.mulf %64, %65 : vector<1x256xf32>
    %67 = math.floor %58 : vector<1x256xf32>
    %68 = math.floor %66 : vector<1x256xf32>
    %69 = arith.subf %58, %67 : vector<1x256xf32>
    %cst_26 = arith.constant 1.000000e+00 : f32
    %70 = vector.broadcast %cst_26 : f32 to vector<1x256xf32>
    %71 = arith.subf %70, %69 : vector<1x256xf32>
    %72 = arith.subf %66, %68 : vector<1x256xf32>
    %cst_27 = arith.constant 1.000000e+00 : f32
    %73 = vector.broadcast %cst_27 : f32 to vector<1x256xf32>
    %74 = arith.subf %73, %72 : vector<1x256xf32>
    %75 = arith.fptosi %67 : vector<1x256xf32> to vector<1x256xi32>
    %76 = arith.fptosi %68 : vector<1x256xf32> to vector<1x256xi32>
    %77 = tpu.iota {dimensions = array<i32: 0>} : vector<16x256xi32>
    %78 = tpu.iota {dimensions = array<i32: 0>} : vector<16x256xi32>
    %79 = vector.broadcast %75 : vector<1x256xi32> to vector<16x256xi32>
    %80 = arith.cmpi eq, %77, %79 : vector<16x256xi32>
    %cst_28 = arith.constant 0.000000e+00 : f32
    %81 = vector.shape_cast %71 : vector<1x256xf32> to vector<1x256xf32>
    %82 = vector.broadcast %81 : vector<1x256xf32> to vector<16x256xf32>
    %83 = vector.broadcast %cst_28 : f32 to vector<16x256xf32>
    %84 = arith.select %80, %82, %83 : vector<16x256xi1>, vector<16x256xf32>
    %c1_i32 = arith.constant 1 : i32
    %85 = vector.broadcast %c1_i32 : i32 to vector<1x256xi32>
    %86 = arith.addi %75, %85 : vector<1x256xi32>
    %87 = vector.broadcast %86 : vector<1x256xi32> to vector<16x256xi32>
    %88 = arith.cmpi eq, %77, %87 : vector<16x256xi32>
    %cst_29 = arith.constant 0.000000e+00 : f32
    %89 = vector.shape_cast %69 : vector<1x256xf32> to vector<1x256xf32>
    %90 = vector.broadcast %89 : vector<1x256xf32> to vector<16x256xf32>
    %91 = vector.broadcast %cst_29 : f32 to vector<16x256xf32>
    %92 = arith.select %88, %90, %91 : vector<16x256xi1>, vector<16x256xf32>
    %93 = arith.addf %84, %92 : vector<16x256xf32>
    %94 = vector.broadcast %76 : vector<1x256xi32> to vector<16x256xi32>
    %95 = arith.cmpi eq, %78, %94 : vector<16x256xi32>
    %cst_30 = arith.constant 0.000000e+00 : f32
    %96 = vector.shape_cast %74 : vector<1x256xf32> to vector<1x256xf32>
    %97 = vector.broadcast %96 : vector<1x256xf32> to vector<16x256xf32>
    %98 = vector.broadcast %cst_30 : f32 to vector<16x256xf32>
    %99 = arith.select %95, %97, %98 : vector<16x256xi1>, vector<16x256xf32>
    %c1_i32_31 = arith.constant 1 : i32
    %100 = vector.broadcast %c1_i32_31 : i32 to vector<1x256xi32>
    %101 = arith.addi %76, %100 : vector<1x256xi32>
    %102 = vector.broadcast %101 : vector<1x256xi32> to vector<16x256xi32>
    %103 = arith.cmpi eq, %78, %102 : vector<16x256xi32>
    %cst_32 = arith.constant 0.000000e+00 : f32
    %104 = vector.shape_cast %72 : vector<1x256xf32> to vector<1x256xf32>
    %105 = vector.broadcast %104 : vector<1x256xf32> to vector<16x256xf32>
    %106 = vector.broadcast %cst_32 : f32 to vector<16x256xf32>
    %107 = arith.select %103, %105, %106 : vector<16x256xi1>, vector<16x256xf32>
    %108 = arith.addf %99, %107 : vector<16x256xf32>
    %109 = vector.shape_cast %108 : vector<16x256xf32> to vector<16x1x256xf32>
    %110 = vector.broadcast %109 : vector<16x1x256xf32> to vector<16x16x256xf32>
    %111 = vector.shape_cast %93 : vector<16x256xf32> to vector<1x16x256xf32>
    %112 = vector.broadcast %111 : vector<1x16x256xf32> to vector<16x16x256xf32>
    %113 = arith.mulf %110, %112 : vector<16x16x256xf32>
    %114 = vector.shape_cast %113 : vector<16x16x256xf32> to vector<256x256xf32>
    %115 = arith.truncf %114 : vector<256x256xf32> to vector<256x256xbf16>
    %116 = vector.extract_strided_slice %40 {offsets = [0, 0], sizes = [1, 256], strides = [1, 1]} : vector<4x256xf32> to vector<1x256xf32>
    %117 = vector.extract_strided_slice %40 {offsets = [1, 0], sizes = [1, 256], strides = [1, 1]} : vector<4x256xf32> to vector<1x256xf32>
    %118 = vector.extract_strided_slice %40 {offsets = [2, 0], sizes = [1, 256], strides = [1, 1]} : vector<4x256xf32> to vector<1x256xf32>
    %119 = vector.extract_strided_slice %40 {offsets = [3, 0], sizes = [1, 256], strides = [1, 1]} : vector<4x256xf32> to vector<1x256xf32>
    %c0_33 = arith.constant 0 : index
    %c0_34 = arith.constant 0 : index
    %120 = vector.load %arg10[%c0_33, %c0_34] : memref<32x256xf32, #tpu.memory_space<vmem>>, vector<32x256xf32>
    %c0_35 = arith.constant 0 : index
    %c0_36 = arith.constant 0 : index
    %c0_37 = arith.constant 0 : index
    %121 = vector.load %arg9[%c0_35, %c0_36, %c0_37] : memref<2x32x4xf32, #tpu.memory_space<vmem>>, vector<1x32x4xf32>
    %122 = vector.shape_cast %121 : vector<1x32x4xf32> to vector<32x4xf32>
    %cst_38 = arith.constant dense<0.000000e+00> : vector<32x256xf32>
    %123 = tpu.matmul %122, %40, %cst_38 {dimension_numbers = #tpu.dot_dimension_numbers<[1], [0], [0], [1], [0, 0, 1, 1], [], []>} : vector<32x4xf32>, vector<4x256xf32>, vector<32x256xf32> -> vector<32x256xf32>
    %c0_39 = arith.constant 0 : index
    %c0_40 = arith.constant 0 : index
    %124 = vector.load %arg8[%c0_39, %c0_40] : memref<256x256xbf16, #tpu.memory_space<vmem>>, vector<32x256xbf16>
    %cst_41 = arith.constant dense<0.000000e+00> : vector<32x256xf32>
    %125 = tpu.matmul %124, %115, %cst_41 {dimension_numbers = #tpu.dot_dimension_numbers<[1], [0], [0], [1], [0, 0, 1, 1], [], []>} : vector<32x256xbf16>, vector<256x256xbf16>, vector<32x256xf32> -> vector<32x256xf32>
    %126 = vector.broadcast %116 : vector<1x256xf32> to vector<32x256xf32>
    %127 = arith.mulf %126, %125 : vector<32x256xf32>
    %128 = arith.addf %123, %127 : vector<32x256xf32>
    %c32 = arith.constant 32 : index
    %c0_42 = arith.constant 0 : index
    %129 = vector.load %arg8[%c32, %c0_42] : memref<256x256xbf16, #tpu.memory_space<vmem>>, vector<32x256xbf16>
    %cst_43 = arith.constant dense<0.000000e+00> : vector<32x256xf32>
    %130 = tpu.matmul %129, %115, %cst_43 {dimension_numbers = #tpu.dot_dimension_numbers<[1], [0], [0], [1], [0, 0, 1, 1], [], []>} : vector<32x256xbf16>, vector<256x256xbf16>, vector<32x256xf32> -> vector<32x256xf32>
    %131 = vector.broadcast %117 : vector<1x256xf32> to vector<32x256xf32>
    %132 = arith.mulf %131, %130 : vector<32x256xf32>
    %133 = arith.addf %128, %132 : vector<32x256xf32>
    %c64 = arith.constant 64 : index
    %c0_44 = arith.constant 0 : index
    %134 = vector.load %arg8[%c64, %c0_44] : memref<256x256xbf16, #tpu.memory_space<vmem>>, vector<32x256xbf16>
    %cst_45 = arith.constant dense<0.000000e+00> : vector<32x256xf32>
    %135 = tpu.matmul %134, %115, %cst_45 {dimension_numbers = #tpu.dot_dimension_numbers<[1], [0], [0], [1], [0, 0, 1, 1], [], []>} : vector<32x256xbf16>, vector<256x256xbf16>, vector<32x256xf32> -> vector<32x256xf32>
    %136 = vector.broadcast %118 : vector<1x256xf32> to vector<32x256xf32>
    %137 = arith.mulf %136, %135 : vector<32x256xf32>
    %138 = arith.addf %133, %137 : vector<32x256xf32>
    %c96 = arith.constant 96 : index
    %c0_46 = arith.constant 0 : index
    %139 = vector.load %arg8[%c96, %c0_46] : memref<256x256xbf16, #tpu.memory_space<vmem>>, vector<32x256xbf16>
    %cst_47 = arith.constant dense<0.000000e+00> : vector<32x256xf32>
    %140 = tpu.matmul %139, %115, %cst_47 {dimension_numbers = #tpu.dot_dimension_numbers<[1], [0], [0], [1], [0, 0, 1, 1], [], []>} : vector<32x256xbf16>, vector<256x256xbf16>, vector<32x256xf32> -> vector<32x256xf32>
    %141 = vector.broadcast %119 : vector<1x256xf32> to vector<32x256xf32>
    %142 = arith.mulf %141, %140 : vector<32x256xf32>
    %143 = arith.addf %138, %142 : vector<32x256xf32>
    %144 = arith.mulf %143, %120 : vector<32x256xf32>
    %cst_48 = arith.constant dense<0.000000e+00> : vector<256xf32>
    %145 = vector.multi_reduction <add>, %144, %cst_48 [0] : vector<32x256xf32> to vector<256xf32>
    %146 = vector.shape_cast %145 : vector<256xf32> to vector<1x256xf32>
    %c1 = arith.constant 1 : index
    %c0_49 = arith.constant 0 : index
    %c0_50 = arith.constant 0 : index
    %147 = vector.load %arg9[%c1, %c0_49, %c0_50] : memref<2x32x4xf32, #tpu.memory_space<vmem>>, vector<1x32x4xf32>
    %148 = vector.shape_cast %147 : vector<1x32x4xf32> to vector<32x4xf32>
    %cst_51 = arith.constant dense<0.000000e+00> : vector<32x256xf32>
    %149 = tpu.matmul %148, %40, %cst_51 {dimension_numbers = #tpu.dot_dimension_numbers<[1], [0], [0], [1], [0, 0, 1, 1], [], []>} : vector<32x4xf32>, vector<4x256xf32>, vector<32x256xf32> -> vector<32x256xf32>
    %c128 = arith.constant 128 : index
    %c0_52 = arith.constant 0 : index
    %150 = vector.load %arg8[%c128, %c0_52] : memref<256x256xbf16, #tpu.memory_space<vmem>>, vector<32x256xbf16>
    %cst_53 = arith.constant dense<0.000000e+00> : vector<32x256xf32>
    %151 = tpu.matmul %150, %115, %cst_53 {dimension_numbers = #tpu.dot_dimension_numbers<[1], [0], [0], [1], [0, 0, 1, 1], [], []>} : vector<32x256xbf16>, vector<256x256xbf16>, vector<32x256xf32> -> vector<32x256xf32>
    %152 = vector.broadcast %116 : vector<1x256xf32> to vector<32x256xf32>
    %153 = arith.mulf %152, %151 : vector<32x256xf32>
    %154 = arith.addf %149, %153 : vector<32x256xf32>
    %c160 = arith.constant 160 : index
    %c0_54 = arith.constant 0 : index
    %155 = vector.load %arg8[%c160, %c0_54] : memref<256x256xbf16, #tpu.memory_space<vmem>>, vector<32x256xbf16>
    %cst_55 = arith.constant dense<0.000000e+00> : vector<32x256xf32>
    %156 = tpu.matmul %155, %115, %cst_55 {dimension_numbers = #tpu.dot_dimension_numbers<[1], [0], [0], [1], [0, 0, 1, 1], [], []>} : vector<32x256xbf16>, vector<256x256xbf16>, vector<32x256xf32> -> vector<32x256xf32>
    %157 = vector.broadcast %117 : vector<1x256xf32> to vector<32x256xf32>
    %158 = arith.mulf %157, %156 : vector<32x256xf32>
    %159 = arith.addf %154, %158 : vector<32x256xf32>
    %c192 = arith.constant 192 : index
    %c0_56 = arith.constant 0 : index
    %160 = vector.load %arg8[%c192, %c0_56] : memref<256x256xbf16, #tpu.memory_space<vmem>>, vector<32x256xbf16>
    %cst_57 = arith.constant dense<0.000000e+00> : vector<32x256xf32>
    %161 = tpu.matmul %160, %115, %cst_57 {dimension_numbers = #tpu.dot_dimension_numbers<[1], [0], [0], [1], [0, 0, 1, 1], [], []>} : vector<32x256xbf16>, vector<256x256xbf16>, vector<32x256xf32> -> vector<32x256xf32>
    %162 = vector.broadcast %118 : vector<1x256xf32> to vector<32x256xf32>
    %163 = arith.mulf %162, %161 : vector<32x256xf32>
    %164 = arith.addf %159, %163 : vector<32x256xf32>
    %c224 = arith.constant 224 : index
    %c0_58 = arith.constant 0 : index
    %165 = vector.load %arg8[%c224, %c0_58] : memref<256x256xbf16, #tpu.memory_space<vmem>>, vector<32x256xbf16>
    %cst_59 = arith.constant dense<0.000000e+00> : vector<32x256xf32>
    %166 = tpu.matmul %165, %115, %cst_59 {dimension_numbers = #tpu.dot_dimension_numbers<[1], [0], [0], [1], [0, 0, 1, 1], [], []>} : vector<32x256xbf16>, vector<256x256xbf16>, vector<32x256xf32> -> vector<32x256xf32>
    %167 = vector.broadcast %119 : vector<1x256xf32> to vector<32x256xf32>
    %168 = arith.mulf %167, %166 : vector<32x256xf32>
    %169 = arith.addf %164, %168 : vector<32x256xf32>
    %170 = arith.mulf %169, %120 : vector<32x256xf32>
    %cst_60 = arith.constant dense<0.000000e+00> : vector<256xf32>
    %171 = vector.multi_reduction <add>, %170, %cst_60 [0] : vector<32x256xf32> to vector<256xf32>
    %172 = vector.shape_cast %171 : vector<256xf32> to vector<1x256xf32>
    %173 = tpu.concatenate %146, %172 in 0 : vector<1x256xf32>, vector<1x256xf32> -> vector<2x256xf32>
    %cst_61 = arith.constant 1.250000e-02 : f32
    %174 = vector.broadcast %cst_61 : f32 to vector<2x256xf32>
    %175 = arith.mulf %173, %174 : vector<2x256xf32>
    %c0_62 = arith.constant 0 : index
    %c0_63 = arith.constant 0 : index
    %176 = vector.load %arg11[%c0_62, %c0_63] : memref<2x256xf32, #tpu.memory_space<vmem>>, vector<2x256xf32>
    %177 = arith.addf %175, %176 : vector<2x256xf32>
    %c0_64 = arith.constant 0 : index
    %c0_65 = arith.constant 0 : index
    %178 = vector.load %arg12[%c0_64, %c0_65] : memref<2x256xf32, #tpu.memory_space<vmem>>, vector<2x256xf32>
    tpu.vector_store %arg12[%c0_64, %c0_65], %177 {strides = array<i32>} : memref<2x256xf32, #tpu.memory_space<vmem>>, vector<2x256xf32>,
    return
  }
  func.func @transform_0(%arg0: i32) -> (i32, i32) {
    %c0_i32 = arith.constant 0 : i32
    %c0_i32_0 = arith.constant 0 : i32
    return %c0_i32, %arg0 : i32, i32
  }
  func.func @transform_1(%arg0: i32) -> (i32, i32) {
    %c0_i32 = arith.constant 0 : i32
    %c0_i32_0 = arith.constant 0 : i32
    %c0_i32_1 = arith.constant 0 : i32
    return %c0_i32, %c0_i32_0 : i32, i32
  }
  func.func @transform_2(%arg0: i32) -> (i32, i32) {
    %c0_i32 = arith.constant 0 : i32
    %c0_i32_0 = arith.constant 0 : i32
    %c0_i32_1 = arith.constant 0 : i32
    return %c0_i32, %c0_i32_0 : i32, i32
  }
  func.func @transform_3(%arg0: i32) -> (i32, i32) {
    %c0_i32 = arith.constant 0 : i32
    %c0_i32_0 = arith.constant 0 : i32
    %c0_i32_1 = arith.constant 0 : i32
    return %c0_i32, %c0_i32_0 : i32, i32
  }
  func.func @transform_4(%arg0: i32) -> (i32, i32) {
    %c0_i32 = arith.constant 0 : i32
    %c0_i32_0 = arith.constant 0 : i32
    %c0_i32_1 = arith.constant 0 : i32
    return %c0_i32, %c0_i32_0 : i32, i32
  }
  func.func @transform_5(%arg0: i32) -> (i32, i32) {
    %c0_i32 = arith.constant 0 : i32
    %c0_i32_0 = arith.constant 0 : i32
    %c0_i32_1 = arith.constant 0 : i32
    return %c0_i32, %c0_i32_0 : i32, i32
  }
  func.func @transform_6(%arg0: i32) -> (i32, i32) {
    %c0_i32 = arith.constant 0 : i32
    %c0_i32_0 = arith.constant 0 : i32
    %c0_i32_1 = arith.constant 0 : i32
    return %c0_i32, %c0_i32_0 : i32, i32
  }
  func.func @transform_7(%arg0: i32) -> (i32, i32) {
    %c0_i32 = arith.constant 0 : i32
    %c0_i32_0 = arith.constant 0 : i32
    %c0_i32_1 = arith.constant 0 : i32
    return %c0_i32, %c0_i32_0 : i32, i32
  }
  func.func @transform_8(%arg0: i32) -> (i32, i32, i32) {
    %c0_i32 = arith.constant 0 : i32
    %c0_i32_0 = arith.constant 0 : i32
    %c0_i32_1 = arith.constant 0 : i32
    %c0_i32_2 = arith.constant 0 : i32
    return %c0_i32, %c0_i32_0, %c0_i32_1 : i32, i32, i32
  }
  func.func @transform_9(%arg0: i32) -> (i32, i32) {
    %c0_i32 = arith.constant 0 : i32
    %c0_i32_0 = arith.constant 0 : i32
    return %c0_i32, %arg0 : i32, i32
  }
  func.func @transform_10(%arg0: i32) -> (i32, i32) {
    %c0_i32 = arith.constant 0 : i32
    %c0_i32_0 = arith.constant 0 : i32
    return %c0_i32, %arg0 : i32, i32
  }
  func.func @transform_11(%arg0: i32) -> (i32, i32) {
    %c0_i32 = arith.constant 0 : i32
    %c0_i32_0 = arith.constant 0 : i32
    return %c0_i32, %arg0 : i32, i32
  }
}

</mosaic_0001>

<llo_original>
// kernel: tpu_custom_call.1
$region0: #{tpu_custom_call.1}
  #allocation0 [shape = 'u32[]', space=smem, size = 0x4, offset = 0x4, fixed_abs, tag = 'smem constant byte address 0x4 - core index']
  #allocation1 [shape = 'u32[144,128]{1,0:T(1,128)}', space=vmem, size = 0x12000, scoped, tag = 'internal scratch']
  %s0 = inlined_call_operand.vmem [shape: f32[3,1024], index: 0, kind: input, shape index: {}]
  %s1 = inlined_call_operand.vmem [shape: f32[64,3], index: 1, kind: input, shape index: {}]
  %s2 = inlined_call_operand.vmem [shape: f32[64,1], index: 2, kind: input, shape index: {}]
  %s3 = inlined_call_operand.vmem [shape: f32[4,32], index: 3, kind: input, shape index: {}]
  %s4 = inlined_call_operand.vmem [shape: f32[4,1], index: 4, kind: input, shape index: {}]
  %s5 = inlined_call_operand.vmem [shape: f32[2,32], index: 5, kind: input, shape index: {}]
  %s6 = inlined_call_operand.vmem [shape: f32[2,1], index: 6, kind: input, shape index: {}]
  %s7 = inlined_call_operand.hbm [shape: bf16[256,256], index: 7, kind: input, shape index: {}]
  %s8 = inlined_call_operand.vmem [shape: f32[2,32,4], index: 8, kind: input, shape index: {}]
  %s9 = inlined_call_operand.hbm [shape: f32[32,1024], index: 9, kind: input, shape index: {}]
  %s10 = inlined_call_operand.vmem [shape: f32[2,1024], index: 10, kind: input, shape index: {}]
  %s11 = inlined_call_operand.hbm [shape: f32[2,1024], index: 11, kind: output, shape index: {}]
  %s12 = sld [smem:[#allocation0]]
  $region85: #{tpu_custom_call.1} parent=0
    _
  %s14 = ssub.s32 1, %s12
  %s15 = scalar_select 0, %s14, %s12
  $region1: #{tpu_custom_call.1} parent=0
    #allocation2 [shape = 'u8[131072]{0}', space=vmem, size = 0x20000, scoped, tag = 'input window, operand 7, single buffered']
    #allocation3 [shape = 's32[2]{0}', space=sflag, size = 0x8, scoped, tag = 'scoped memory for tpu_custom_call.1']
    #allocation4 [shape = 's32[2]{0}', space=sflag, size = 0x8, scoped, tag = 'scoped memory for tpu_custom_call.1']
    #allocation5 [shape = 'u8[65536]{0}', space=vmem, size = 0x10000, scoped, tag = 'input window, operand 9']
    #allocation6 [shape = 's32[2]{0}', space=sflag, size = 0x8, scoped, tag = 'scoped memory for tpu_custom_call.1']
    #allocation7 [shape = 'u8[4096]{0}', space=vmem, size = 0x1000, scoped, tag = 'output window, operand 0']
    %16 = vsyncpa [#allocation3], 0
    %17 = vsyncpa [#allocation6], 0
    %s18 = scalar_lea.sflag [#allocation6], 1
    %19 = vsyncpa %s18, 0
    %20 = vsyncpa [#allocation4], 0
    %s21 = scalar_lea.sflag [#allocation4], 1
    %22 = vsyncpa %s21, 0
    loop: start=0, step=1, limit=6
    $region2: #{tpu_custom_call.1} parent=1 // loop_pre_header
      _
    $region3: #{tpu_custom_call.1} parent=1 // loop_header
      %s24 = sphi 0, %s28
      %p25 = scmp.ge.s32.totalorder %s24, 6
      %s34 = sphi 0, %s36
      %s37 = sphi 0, %s34
      %s38 = sphi 0, %s37
      %s54 = sphi 0, %s38
      %s58 = sphi 0, %s58
      %s60 = sphi 0, %s58
      %s61 = sphi 0, %s60
      %s75 = sphi 0, %s61
      %s79 = sphi 0, %s79
      %s81 = sphi 0, %s79
      %s82 = sphi 0, %s81
      %s96 = sphi 0, %s82
      %s100 = sphi 0, %s100
      %s102 = sphi 0, %s100
      %s103 = sphi 0, %s102
      %s117 = sphi 0, %s103
      %s121 = sphi 0, %s121
      %s123 = sphi 0, %s121
      %s124 = sphi 0, %s123
      %s138 = sphi 0, %s124
      %s142 = sphi 0, %s142
      %s144 = sphi 0, %s142
      %s145 = sphi 0, %s144
      %s159 = sphi 0, %s145
      %s163 = sphi 0, %s163
      %s165 = sphi 0, %s163
      %s166 = sphi 0, %s165
      %s180 = sphi 0, %s166
      %s184 = sphi 0, %s184
      %s186 = sphi 0, %s184
      %s187 = sphi 0, %s186
      %s201 = sphi 0, %s187
      %s205 = sphi 0, %s205
      %s207 = sphi 0, %s205
      %s208 = sphi 0, %s207
      %s222 = sphi 0, %s208
      %s228 = sphi 0, %s230
      %s231 = sphi 0, %s228
      %s232 = sphi 0, %s231
      %s248 = sphi 0, %s232
      %s254 = sphi 0, %s256
      %s257 = sphi 0, %s254
      %s258 = sphi 0, %s257
      %s274 = sphi 0, %s258
      %s280 = sphi 0, %s282
      %s283 = sphi 0, %s280
      %s284 = sphi 0, %s283
      %s300 = sphi 0, %s284
    $region4: #{tpu_custom_call.1} parent=1 // loop_header_branch
      %27 = sbr.rel (%p25) target = $region8
    $region5: #{tpu_custom_call.1} parent=1 // loop_body
      %s29 = ssub.s32 %s24, 1
      %s30 = ssub.s32 %s24, 2
      %s31 = sadd.s32 %s24, 1
      %s32 = ssub.s32 %s24, %s31
      %p33 = scmp.eq.s32.totalorder %s32, 0
      %s35 = sadd.s32 %s34, 1
      %s36 = scalar_select %p33, %s34, %s35
      %p39 = pneg %p33
      %p40 = scmp.eq.s32.totalorder %s24, 3
      %p41 = por %p39, %p40
      %p42 = scmp.ne.s32.totalorder %s34, %s37
      %p43 = scmp.eq.s32.totalorder %s24, 0
      %p44 = por %p42, %p43
      %p45 = scmp.ne.s32.totalorder %s34, %s37
      %p46 = scmp.eq.s32.totalorder %s29, 3
      %p47 = por %p45, %p46
      %p48 = scmp.ne.s32.totalorder %s37, %s38
      %p49 = scmp.eq.s32.totalorder %s29, 0
      %p50 = por %p48, %p49
      %p51 = scmp.ne.s32.totalorder %s37, %s38
      %p52 = scmp.eq.s32.totalorder %s30, 3
      %p53 = por %p51, %p52
      %p55 = scmp.ne.s32.totalorder %s38, %s54
      %p56 = scmp.eq.s32.totalorder %s30, 0
      %p57 = por %p55, %p56
      %s59 = sadd.s32 %s58, 1
      %p62 = scmp.eq.s32.totalorder %s24, 3
      %p63 = scmp.ne.s32.totalorder %s58, %s60
      %p64 = scmp.eq.s32.totalorder %s24, 0
      %p65 = por %p63, %p64
      %p66 = scmp.ne.s32.totalorder %s58, %s60
      %p67 = scmp.eq.s32.totalorder %s29, 3
      %p68 = por %p66, %p67
      %p69 = scmp.ne.s32.totalorder %s60, %s61
      %p70 = scmp.eq.s32.totalorder %s29, 0
      %p71 = por %p69, %p70
      %p72 = scmp.ne.s32.totalorder %s60, %s61
      %p73 = scmp.eq.s32.totalorder %s30, 3
      %p74 = por %p72, %p73
      %p76 = scmp.ne.s32.totalorder %s61, %s75
      %p77 = scmp.eq.s32.totalorder %s30, 0
      %p78 = por %p76, %p77
      %s80 = sadd.s32 %s79, 1
      %p83 = scmp.eq.s32.totalorder %s24, 3
      %p84 = scmp.ne.s32.totalorder %s79, %s81
      %p85 = scmp.eq.s32.totalorder %s24, 0
      %p86 = por %p84, %p85
      %p87 = scmp.ne.s32.totalorder %s79, %s81
      %p88 = scmp.eq.s32.totalorder %s29, 3
      %p89 = por %p87, %p88
      %p90 = scmp.ne.s32.totalorder %s81, %s82
      %p91 = scmp.eq.s32.totalorder %s29, 0
      %p92 = por %p90, %p91
      %p93 = scmp.ne.s32.totalorder %s81, %s82
      %p94 = scmp.eq.s32.totalorder %s30, 3
      %p95 = por %p93, %p94
      %p97 = scmp.ne.s32.totalorder %s82, %s96
      %p98 = scmp.eq.s32.totalorder %s30, 0
      %p99 = por %p97, %p98
      %s101 = sadd.s32 %s100, 1
      %p104 = scmp.eq.s32.totalorder %s24, 3
      %p105 = scmp.ne.s32.totalorder %s100, %s102
      %p106 = scmp.eq.s32.totalorder %s24, 0
      %p107 = por %p105, %p106
      %p108 = scmp.ne.s32.totalorder %s100, %s102
      %p109 = scmp.eq.s32.totalorder %s29, 3
      %p110 = por %p108, %p109
      %p111 = scmp.ne.s32.totalorder %s102, %s103
      %p112 = scmp.eq.s32.totalorder %s29, 0
      %p113 = por %p111, %p112
      %p114 = scmp.ne.s32.totalorder %s102, %s103
      %p115 = scmp.eq.s32.totalorder %s30, 3
      %p116 = por %p114, %p115
      %p118 = scmp.ne.s32.totalorder %s103, %s117
      %p119 = scmp.eq.s32.totalorder %s30, 0
      %p120 = por %p118, %p119
      %s122 = sadd.s32 %s121, 1
      %p125 = scmp.eq.s32.totalorder %s24, 3
      %p126 = scmp.ne.s32.totalorder %s121, %s123
      %p127 = scmp.eq.s32.totalorder %s24, 0
      %p128 = por %p126, %p127
      %p129 = scmp.ne.s32.totalorder %s121, %s123
      %p130 = scmp.eq.s32.totalorder %s29, 3
      %p131 = por %p129, %p130
      %p132 = scmp.ne.s32.totalorder %s123, %s124
      %p133 = scmp.eq.s32.totalorder %s29, 0
      %p134 = por %p132, %p133
      %p135 = scmp.ne.s32.totalorder %s123, %s124
      %p136 = scmp.eq.s32.totalorder %s30, 3
      %p137 = por %p135, %p136
      %p139 = scmp.ne.s32.totalorder %s124, %s138
      %p140 = scmp.eq.s32.totalorder %s30, 0
      %p141 = por %p139, %p140
      %s143 = sadd.s32 %s142, 1
      %p146 = scmp.eq.s32.totalorder %s24, 3
      %p147 = scmp.ne.s32.totalorder %s142, %s144
      %p148 = scmp.eq.s32.totalorder %s24, 0
      %p149 = por %p147, %p148
      %p150 = scmp.ne.s32.totalorder %s142, %s144
      %p151 = scmp.eq.s32.totalorder %s29, 3
      %p152 = por %p150, %p151
      %p153 = scmp.ne.s32.totalorder %s144, %s145
      %p154 = scmp.eq.s32.totalorder %s29, 0
      %p155 = por %p153, %p154
      %p156 = scmp.ne.s32.totalorder %s144, %s145
      %p157 = scmp.eq.s32.totalorder %s30, 3
      %p158 = por %p156, %p157
      %p160 = scmp.ne.s32.totalorder %s145, %s159
      %p161 = scmp.eq.s32.totalorder %s30, 0
      %p162 = por %p160, %p161
      %s164 = sadd.s32 %s163, 1
      %p167 = scmp.eq.s32.totalorder %s24, 3
      %p168 = scmp.ne.s32.totalorder %s163, %s165
      %p169 = scmp.eq.s32.totalorder %s24, 0
      %p170 = por %p168, %p169
      %p171 = scmp.ne.s32.totalorder %s163, %s165
      %p172 = scmp.eq.s32.totalorder %s29, 3
      %p173 = por %p171, %p172
      %p174 = scmp.ne.s32.totalorder %s165, %s166
      %p175 = scmp.eq.s32.totalorder %s29, 0
      %p176 = por %p174, %p175
      %p177 = scmp.ne.s32.totalorder %s165, %s166
      %p178 = scmp.eq.s32.totalorder %s30, 3
      %p179 = por %p177, %p178
      %p181 = scmp.ne.s32.totalorder %s166, %s180
      %p182 = scmp.eq.s32.totalorder %s30, 0
      %p183 = por %p181, %p182
      %s185 = sadd.s32 %s184, 1
      %p188 = scmp.eq.s32.totalorder %s24, 3
      %p189 = scmp.ne.s32.totalorder %s184, %s186
      %p190 = scmp.eq.s32.totalorder %s24, 0
      %p191 = por %p189, %p190
      %p192 = scmp.ne.s32.totalorder %s184, %s186
      %p193 = scmp.eq.s32.totalorder %s29, 3
      %p194 = por %p192, %p193
      %p195 = scmp.ne.s32.totalorder %s186, %s187
      %p196 = scmp.eq.s32.totalorder %s29, 0
      %p197 = por %p195, %p196
      %p198 = scmp.ne.s32.totalorder %s186, %s187
      %p199 = scmp.eq.s32.totalorder %s30, 3
      %p200 = por %p198, %p199
      %p202 = scmp.ne.s32.totalorder %s187, %s201
      %p203 = scmp.eq.s32.totalorder %s30, 0
      %p204 = por %p202, %p203
      %s206 = sadd.s32 %s205, 1
      %p209 = scmp.eq.s32.totalorder %s24, 3
      %p210 = scmp.ne.s32.totalorder %s205, %s207
      %p211 = scmp.eq.s32.totalorder %s24, 0
      %p212 = por %p210, %p211
      %p213 = scmp.ne.s32.totalorder %s205, %s207
      %p214 = scmp.eq.s32.totalorder %s29, 3
      %p215 = por %p213, %p214
      %p216 = scmp.ne.s32.totalorder %s207, %s208
      %p217 = scmp.eq.s32.totalorder %s29, 0
      %p218 = por %p216, %p217
      %p219 = scmp.ne.s32.totalorder %s207, %s208
      %p220 = scmp.eq.s32.totalorder %s30, 3
      %p221 = por %p219, %p220
      %p223 = scmp.ne.s32.totalorder %s208, %s222
      %p224 = scmp.eq.s32.totalorder %s30, 0
      %p225 = por %p223, %p224
      %s226 = ssub.s32 %s24, %s31
      %p227 = scmp.eq.s32.totalorder %s226, 0
      %s229 = sadd.s32 %s228, 1
      %s230 = scalar_select %p227, %s228, %s229
      %p233 = pneg %p227
      %p234 = scmp.eq.s32.totalorder %s24, 3
      %p235 = por %p233, %p234
      %p236 = scmp.ne.s32.totalorder %s228, %s231
      %p237 = scmp.eq.s32.totalorder %s24, 0
      %p238 = por %p236, %p237
      %p239 = scmp.ne.s32.totalorder %s228, %s231
      %p240 = scmp.eq.s32.totalorder %s29, 3
      %p241 = por %p239, %p240
      %p242 = scmp.ne.s32.totalorder %s231, %s232
      %p243 = scmp.eq.s32.totalorder %s29, 0
      %p244 = por %p242, %p243
      %p245 = scmp.ne.s32.totalorder %s231, %s232
      %p246 = scmp.eq.s32.totalorder %s30, 3
      %p247 = por %p245, %p246
      %p249 = scmp.ne.s32.totalorder %s232, %s248
      %p250 = scmp.eq.s32.totalorder %s30, 0
      %p251 = por %p249, %p250
      %s252 = ssub.s32 %s24, %s31
      %p253 = scmp.eq.s32.totalorder %s252, 0
      %s255 = sadd.s32 %s254, 1
      %s256 = scalar_select %p253, %s254, %s255
      %p259 = pneg %p253
      %p260 = scmp.eq.s32.totalorder %s24, 3
      %p261 = por %p259, %p260
      %p262 = scmp.ne.s32.totalorder %s254, %s257
      %p263 = scmp.eq.s32.totalorder %s24, 0
      %p264 = por %p262, %p263
      %p265 = scmp.ne.s32.totalorder %s254, %s257
      %p266 = scmp.eq.s32.totalorder %s29, 3
      %p267 = por %p265, %p266
      %p268 = scmp.ne.s32.totalorder %s257, %s258
      %p269 = scmp.eq.s32.totalorder %s29, 0
      %p270 = por %p268, %p269
      %p271 = scmp.ne.s32.totalorder %s257, %s258
      %p272 = scmp.eq.s32.totalorder %s30, 3
      %p273 = por %p271, %p272
      %p275 = scmp.ne.s32.totalorder %s258, %s274
      %p276 = scmp.eq.s32.totalorder %s30, 0
      %p277 = por %p275, %p276
      %s278 = ssub.s32 %s24, %s31
      %p279 = scmp.eq.s32.totalorder %s278, 0
      %s281 = sadd.s32 %s280, 1
      %s282 = scalar_select %p279, %s280, %s281
      %p285 = pneg %p279
      %p286 = scmp.eq.s32.totalorder %s24, 3
      %p287 = por %p285, %p286
      %p288 = scmp.ne.s32.totalorder %s280, %s283
      %p289 = scmp.eq.s32.totalorder %s24, 0
      %p290 = por %p288, %p289
      %p291 = scmp.ne.s32.totalorder %s280, %s283
      %p292 = scmp.eq.s32.totalorder %s29, 3
      %p293 = por %p291, %p292
      %p294 = scmp.ne.s32.totalorder %s283, %s284
      %p295 = scmp.eq.s32.totalorder %s29, 0
      %p296 = por %p294, %p295
      %p297 = scmp.ne.s32.totalorder %s283, %s284
      %p298 = scmp.eq.s32.totalorder %s30, 3
      %p299 = por %p297, %p298
      %p301 = scmp.ne.s32.totalorder %s284, %s300
      %p302 = scmp.eq.s32.totalorder %s30, 0
      %p303 = por %p301, %p302
      %p304 = scmp.le.s32.totalorder 1, %s24
      %p305 = scmp.lt.s32.totalorder %s24, 5
      %p306 = pnand %p304, %p305
      %p307 = pneg %p306
      // Predicated region
      $region9: #{tpu_custom_call.1} parent=5 // pred_check
        _
      $region10: #{tpu_custom_call.1} parent=5 // pred_check_branch
        %309 = sbr.rel (%p306) target = $region12
      $region11: #{tpu_custom_call.1} parent=5 // pred_region
        %s310 = ssub.s32 %s24, 1
        // Predicated region
        $region13: #{tpu_custom_call.1} parent=11 // pred_check
          %p311 = pneg %p71
        $region14: #{tpu_custom_call.1} parent=11 // pred_check_branch
          %313 = sbr.rel (%p311) target = $region16
        $region15: #{tpu_custom_call.1} parent=11 // pred_region
          _
        $region16: #{tpu_custom_call.1} parent=11 // pred_fallthru
          _
        // Predicated region
        $region17: #{tpu_custom_call.1} parent=11 // pred_check
          %p314 = pneg %p92
        $region18: #{tpu_custom_call.1} parent=11 // pred_check_branch
          %316 = sbr.rel (%p314) target = $region20
        $region19: #{tpu_custom_call.1} parent=11 // pred_region
          _
        $region20: #{tpu_custom_call.1} parent=11 // pred_fallthru
          _
        // Predicated region
        $region21: #{tpu_custom_call.1} parent=11 // pred_check
          %p317 = pneg %p113
        $region22: #{tpu_custom_call.1} parent=11 // pred_check_branch
          %319 = sbr.rel (%p317) target = $region24
        $region23: #{tpu_custom_call.1} parent=11 // pred_region
          _
        $region24: #{tpu_custom_call.1} parent=11 // pred_fallthru
          _
        // Predicated region
        $region25: #{tpu_custom_call.1} parent=11 // pred_check
          %p320 = pneg %p134
        $region26: #{tpu_custom_call.1} parent=11 // pred_check_branch
          %322 = sbr.rel (%p320) target = $region28
        $region27: #{tpu_custom_call.1} parent=11 // pred_region
          _
        $region28: #{tpu_custom_call.1} parent=11 // pred_fallthru
          _
        // Predicated region
        $region29: #{tpu_custom_call.1} parent=11 // pred_check
          %p323 = pneg %p155
        $region30: #{tpu_custom_call.1} parent=11 // pred_check_branch
          %325 = sbr.rel (%p323) target = $region32
        $region31: #{tpu_custom_call.1} parent=11 // pred_region
          _
        $region32: #{tpu_custom_call.1} parent=11 // pred_fallthru
          _
        // Predicated region
        $region33: #{tpu_custom_call.1} parent=11 // pred_check
          %p326 = pneg %p176
        $region34: #{tpu_custom_call.1} parent=11 // pred_check_branch
          %328 = sbr.rel (%p326) target = $region36
        $region35: #{tpu_custom_call.1} parent=11 // pred_region
          _
        $region36: #{tpu_custom_call.1} parent=11 // pred_fallthru
          _
        // Predicated region
        $region37: #{tpu_custom_call.1} parent=11 // pred_check
          %p329 = pneg %p197
        $region38: #{tpu_custom_call.1} parent=11 // pred_check_branch
          %331 = sbr.rel (%p329) target = $region40
        $region39: #{tpu_custom_call.1} parent=11 // pred_region
          %s333 = ssub.s32 4096, 4096
          %334 = vsyncadd [#allocation3], %s333
          %s335 = sshll.u32 [#allocation2], 4
          %s336 = int_to_ptr.vmem [resolvable:$true] %s335
          %341 = dma.hbm_to_vmem [thread:$0]  %s7, 4096, %s336, [#allocation3], 128, 128, 8
        $region40: #{tpu_custom_call.1} parent=11 // pred_fallthru
          _
        // Predicated region
        $region41: #{tpu_custom_call.1} parent=11 // pred_check
          %p342 = pneg %p218
        $region42: #{tpu_custom_call.1} parent=11 // pred_check_branch
          %344 = sbr.rel (%p342) target = $region44
        $region43: #{tpu_custom_call.1} parent=11 // pred_region
          _
        $region44: #{tpu_custom_call.1} parent=11 // pred_fallthru
          _
      $region12: #{tpu_custom_call.1} parent=5 // pred_fallthru
        _
      %p345 = scmp.lt.s32.totalorder %s24, 4
      // Predicated region
      $region45: #{tpu_custom_call.1} parent=5 // pred_check
        %p346 = pneg %p345
      $region46: #{tpu_custom_call.1} parent=5 // pred_check_branch
        %348 = sbr.rel (%p346) target = $region48
      $region47: #{tpu_custom_call.1} parent=5 // pred_region
        // Predicated region
        $region49: #{tpu_custom_call.1} parent=47 // pred_check
          %p349 = pneg %p44
        $region50: #{tpu_custom_call.1} parent=47 // pred_check_branch
          %351 = sbr.rel (%p349) target = $region52
        $region51: #{tpu_custom_call.1} parent=47 // pred_region
          %s352 = smul.u32 2, %s24
          %p353 = scmp.lt.s32.totalorder %s352, 7
          %s354 = scalar_select %p353, %s352, 7
          %s355 = smul.addr %s354, 4
          %s356 = scalar_lea.vmem %s0, %s355
          %s357 = smul.u32 2, %s24
        $region52: #{tpu_custom_call.1} parent=47 // pred_fallthru
          _
        // Predicated region
        $region53: #{tpu_custom_call.1} parent=47 // pred_check
          %p358 = pneg %p238
        $region54: #{tpu_custom_call.1} parent=47 // pred_check_branch
          %360 = sbr.rel (%p358) target = $region56
        $region55: #{tpu_custom_call.1} parent=47 // pred_region
          %s361 = sand.u32 %s228, 1
          %s362 = scalar_lea.sflag [#allocation6], %s361
          %s363 = sand.u32 %s228, 1
          %s364 = smul.addr %s363, 64
          %s365 = scalar_lea.vmem [#allocation5], %s364
          %s366 = smul.u32 2, %s24
          %s368 = ssub.s32 1024, 1024
          %369 = vsyncadd %s362, %s368
          %s370 = smul.addr %s366, 128
          %s371 = scalar_lea.hbm %s9, %s370
          %s372 = sshll.u32 %s365, 4
          %s373 = int_to_ptr.vmem [resolvable:$true] %s372
          %378 = dma.hbm_to_vmem [thread:$0]  %s371, 1024, %s373, %s362, 1024, 256, 16
        $region56: #{tpu_custom_call.1} parent=47 // pred_fallthru
          _
        // Predicated region
        $region57: #{tpu_custom_call.1} parent=47 // pred_check
          %p379 = pneg %p264
        $region58: #{tpu_custom_call.1} parent=47 // pred_check_branch
          %381 = sbr.rel (%p379) target = $region60
        $region59: #{tpu_custom_call.1} parent=47 // pred_region
          %s382 = smul.u32 2, %s24
          %p383 = scmp.lt.s32.totalorder %s382, 7
          %s384 = scalar_select %p383, %s382, 7
          %s385 = smul.addr %s384, 2
          %s386 = scalar_lea.vmem %s10, %s385
          %s387 = smul.u32 2, %s24
        $region60: #{tpu_custom_call.1} parent=47 // pred_fallthru
          _
      $region48: #{tpu_custom_call.1} parent=5 // pred_fallthru
        _
      %p388 = scmp.le.s32.totalorder 1, %s24
      %p389 = scmp.lt.s32.totalorder %s24, 5
      %p390 = pnand %p388, %p389
      %p391 = pneg %p390
      // Predicated region
      $region61: #{tpu_custom_call.1} parent=5 // pred_check
        _
      $region62: #{tpu_custom_call.1} parent=5 // pred_check_branch
        %393 = sbr.rel (%p390) target = $region64
      $region63: #{tpu_custom_call.1} parent=5 // pred_region
        %s394 = ssub.s32 %s24, 1
        // Predicated region
        $region65: #{tpu_custom_call.1} parent=63 // pred_check
          %p395 = pneg %p197
        $region66: #{tpu_custom_call.1} parent=63 // pred_check_branch
          %397 = sbr.rel (%p395) target = $region68
        $region67: #{tpu_custom_call.1} parent=63 // pred_region
          %398 = dma.done [#allocation3], 4096
        $region68: #{tpu_custom_call.1} parent=63 // pred_fallthru
          _
        %s399 = sand.u32 %s231, 1
        %s400 = scalar_lea.sflag [#allocation6], %s399
        %s401 = sand.u32 %s231, 1
        %s402 = smul.addr %s401, 64
        %s403 = scalar_lea.vmem [#allocation5], %s402
        // Predicated region
        $region69: #{tpu_custom_call.1} parent=63 // pred_check
          %p404 = pneg %p244
        $region70: #{tpu_custom_call.1} parent=63 // pred_check_branch
          %406 = sbr.rel (%p404) target = $region72
        $region71: #{tpu_custom_call.1} parent=63 // pred_region
          %407 = dma.done %s400, 1024
        $region72: #{tpu_custom_call.1} parent=63 // pred_fallthru
          _
        %s408 = smul.u32 2, %s29
        %p409 = scmp.lt.s32.totalorder %s408, 7
        %s410 = scalar_select %p409, %s408, 7
        %s411 = smul.addr %s410, 4
        %s412 = scalar_lea.vmem %s0, %s411
        %p413 = pneg %p50
        %p414 = pneg %p47
        %p415 = pneg %p71
        %p416 = pneg %p68
        %p417 = pneg %p92
        %p418 = pneg %p89
        %p419 = pneg %p113
        %p420 = pneg %p110
        %p421 = pneg %p134
        %p422 = pneg %p131
        %p423 = pneg %p155
        %p424 = pneg %p152
        %p425 = pneg %p176
        %p426 = pneg %p173
        %p427 = pneg %p197
        %p428 = pneg %p194
        %p429 = pneg %p218
        %p430 = pneg %p215
        %s431 = sand.u32 %s231, 1
        %s432 = scalar_lea.sflag [#allocation6], %s431
        %s433 = sand.u32 %s231, 1
        %s434 = smul.addr %s433, 64
        %s435 = scalar_lea.vmem [#allocation5], %s434
        %p436 = pneg %p244
        %p437 = pneg %p241
        %s438 = smul.u32 2, %s29
        %p439 = scmp.lt.s32.totalorder %s438, 7
        %s440 = scalar_select %p439, %s438, 7
        %s441 = smul.addr %s440, 2
        %s442 = scalar_lea.vmem %s10, %s441
        %p443 = pneg %p270
        %p444 = pneg %p267
        %p445 = pneg %p296
        %p446 = pneg %p293
        %s447 = sand.u32 %s283, 1
        %s448 = scalar_lea.sflag [#allocation4], %s447
        %s449 = sand.u32 %s283, 1
        %s450 = smul.addr %s449, 4
        %s451 = scalar_lea.vmem [#allocation7], %s450
        %s452 = smul.u32 2, %s29
        %p453 = scmp.lt.s32.totalorder %s452, 7
        %s454 = scalar_select %p453, %s452, 7
        %s455 = smul.addr %s454, 4
        %s456 = scalar_lea.vmem %s0, %s455
        %s457 = smul.u32 2, %s29
        %s458 = smul.u32 2, %s29
        %s459 = smul.u32 2, %s29
        %p460 = scmp.lt.s32.totalorder %s459, 7
        %s461 = scalar_select %p460, %s459, 7
        %s462 = smul.addr %s461, 2
        %s463 = scalar_lea.vmem %s10, %s462
        %s464 = smul.u32 2, %s29
        %s465 = smul.u32 2, %s29
        %v466 = vld [vmem:[%s456] sm:$0x77]
        %v467 = vld [vmem:[%s1] sm:$0xff]
        %v468 = vld [vmem:[%s1 + $0x8] sm:$0xff]
        %v469 = vld [vmem:[%s1 + $0x10] sm:$0xff]
        %v470 = vld [vmem:[%s1 + $0x18] sm:$0xff]
        %v471 = vld [vmem:[%s1 + $0x20] sm:$0xff]
        %v472 = vld [vmem:[%s1 + $0x28] sm:$0xff]
        %v473 = vld [vmem:[%s1 + $0x30] sm:$0xff]
        %v474 = vld [vmem:[%s1 + $0x38] sm:$0xff]
        %476 = vset.pattern.permute.xlu0 0
        %477 = vperm.xlu0 %476, %v467
        %v478 = vpop.permute.xlu0 %477
        %481 = vset.pattern.permute.xlu0 0
        %482 = vperm.xlu0 %481, %v468
        %v483 = vpop.permute.xlu0 %482
        %486 = vset.pattern.permute.xlu0 0
        %487 = vperm.xlu0 %486, %v469
        %v488 = vpop.permute.xlu0 %487
        %491 = vset.pattern.permute.xlu0 0
        %492 = vperm.xlu0 %491, %v470
        %v493 = vpop.permute.xlu0 %492
        %496 = vset.pattern.permute.xlu0 0
        %497 = vperm.xlu0 %496, %v471
        %v498 = vpop.permute.xlu0 %497
        %501 = vset.pattern.permute.xlu0 0
        %502 = vperm.xlu0 %501, %v472
        %v503 = vpop.permute.xlu0 %502
        %506 = vset.pattern.permute.xlu0 0
        %507 = vperm.xlu0 %506, %v473
        %v508 = vpop.permute.xlu0 %507
        %511 = vset.pattern.permute.xlu0 0
        %512 = vperm.xlu0 %511, %v474
        %v513 = vpop.permute.xlu0 %512
        %v516 = vlaneseq
        %v517 = vshrl.u32 %v516, 7
        %v518 = vsub.s32 0, %v517
        %v519 = vrot.slane %v466, %v518
        %v520 = vlaneseq
        %v521 = vshrl.u32 %v520, 7
        %v522 = vsub.s32 4, %v521
        %v523 = vrot.slane %v466, %v522
        %v526 = vlaneseq
        %v527 = vshrl.u32 %v526, 7
        %v528 = vsub.s32 0, %v527
        %v529 = vrot.slane %v519, %v528
        %v530 = vlaneseq
        %v531 = vshrl.u32 %v530, 7
        %v532 = vsub.s32 0, %v531
        %v533 = vrot.slane %v523, %v532
        %v534 = vmul.f32 %v478, %v529
        %v535 = vmul.f32 %v478, %v533
        %v536 = vmul.f32 %v483, %v529
        %v537 = vmul.f32 %v483, %v533
        %v538 = vmul.f32 %v488, %v529
        %v539 = vmul.f32 %v488, %v533
        %v540 = vmul.f32 %v493, %v529
        %v541 = vmul.f32 %v493, %v533
        %v542 = vmul.f32 %v498, %v529
        %v543 = vmul.f32 %v498, %v533
        %v544 = vmul.f32 %v503, %v529
        %v545 = vmul.f32 %v503, %v533
        %v546 = vmul.f32 %v508, %v529
        %v547 = vmul.f32 %v508, %v533
        %v548 = vmul.f32 %v513, %v529
        %v549 = vmul.f32 %v513, %v533
        %550 = vset.pattern.permute.xlu0 1
        %551 = vperm.xlu0 %550, %v467
        %v552 = vpop.permute.xlu0 %551
        %554 = vset.pattern.permute.xlu0 1
        %555 = vperm.xlu0 %554, %v468
        %v556 = vpop.permute.xlu0 %555
        %558 = vset.pattern.permute.xlu0 1
        %559 = vperm.xlu0 %558, %v469
        %v560 = vpop.permute.xlu0 %559
        %562 = vset.pattern.permute.xlu0 1
        %563 = vperm.xlu0 %562, %v470
        %v564 = vpop.permute.xlu0 %563
        %566 = vset.pattern.permute.xlu0 1
        %567 = vperm.xlu0 %566, %v471
        %v568 = vpop.permute.xlu0 %567
        %570 = vset.pattern.permute.xlu0 1
        %571 = vperm.xlu0 %570, %v472
        %v572 = vpop.permute.xlu0 %571
        %574 = vset.pattern.permute.xlu0 1
        %575 = vperm.xlu0 %574, %v473
        %v576 = vpop.permute.xlu0 %575
        %578 = vset.pattern.permute.xlu0 1
        %579 = vperm.xlu0 %578, %v474
        %v580 = vpop.permute.xlu0 %579
        %v582 = vlaneseq
        %v583 = vshrl.u32 %v582, 7
        %v584 = vsub.s32 1, %v583
        %v585 = vrot.slane %v466, %v584
        %v586 = vlaneseq
        %v587 = vshrl.u32 %v586, 7
        %v588 = vsub.s32 5, %v587
        %v589 = vrot.slane %v466, %v588
        %v592 = vlaneseq
        %v593 = vshrl.u32 %v592, 7
        %v594 = vsub.s32 1, %v593
        %v595 = vrot.slane %v585, %v594
        %v596 = vlaneseq
        %v597 = vshrl.u32 %v596, 7
        %v598 = vsub.s32 1, %v597
        %v599 = vrot.slane %v589, %v598
        %v600 = vmul.f32 %v552, %v595
        %v601 = vmul.f32 %v552, %v599
        %v602 = vmul.f32 %v556, %v595
        %v603 = vmul.f32 %v556, %v599
        %v604 = vmul.f32 %v560, %v595
        %v605 = vmul.f32 %v560, %v599
        %v606 = vmul.f32 %v564, %v595
        %v607 = vmul.f32 %v564, %v599
        %v608 = vmul.f32 %v568, %v595
        %v609 = vmul.f32 %v568, %v599
        %v610 = vmul.f32 %v572, %v595
        %v611 = vmul.f32 %v572, %v599
        %v612 = vmul.f32 %v576, %v595
        %v613 = vmul.f32 %v576, %v599
        %v614 = vmul.f32 %v580, %v595
        %v615 = vmul.f32 %v580, %v599
        %v616 = vadd.f32 %v534, %v600
        %v617 = vadd.f32 %v535, %v601
        %v618 = vadd.f32 %v536, %v602
        %v619 = vadd.f32 %v537, %v603
        %v620 = vadd.f32 %v538, %v604
        %v621 = vadd.f32 %v539, %v605
        %v622 = vadd.f32 %v540, %v606
        %v623 = vadd.f32 %v541, %v607
        %v624 = vadd.f32 %v542, %v608
        %v625 = vadd.f32 %v543, %v609
        %v626 = vadd.f32 %v544, %v610
        %v627 = vadd.f32 %v545, %v611
        %v628 = vadd.f32 %v546, %v612
        %v629 = vadd.f32 %v547, %v613
        %v630 = vadd.f32 %v548, %v614
        %v631 = vadd.f32 %v549, %v615
        %632 = vset.pattern.permute.xlu0 2
        %633 = vperm.xlu0 %632, %v467
        %v634 = vpop.permute.xlu0 %633
        %636 = vset.pattern.permute.xlu0 2
        %637 = vperm.xlu0 %636, %v468
        %v638 = vpop.permute.xlu0 %637
        %640 = vset.pattern.permute.xlu0 2
        %641 = vperm.xlu0 %640, %v469
        %v642 = vpop.permute.xlu0 %641
        %644 = vset.pattern.permute.xlu0 2
        %645 = vperm.xlu0 %644, %v470
        %v646 = vpop.permute.xlu0 %645
        %648 = vset.pattern.permute.xlu0 2
        %649 = vperm.xlu0 %648, %v471
        %v650 = vpop.permute.xlu0 %649
        %652 = vset.pattern.permute.xlu0 2
        %653 = vperm.xlu0 %652, %v472
        %v654 = vpop.permute.xlu0 %653
        %656 = vset.pattern.permute.xlu0 2
        %657 = vperm.xlu0 %656, %v473
        %v658 = vpop.permute.xlu0 %657
        %660 = vset.pattern.permute.xlu0 2
        %661 = vperm.xlu0 %660, %v474
        %v662 = vpop.permute.xlu0 %661
        %v664 = vlaneseq
        %v665 = vshrl.u32 %v664, 7
        %v666 = vsub.s32 2, %v665
        %v667 = vrot.slane %v466, %v666
        %v668 = vlaneseq
        %v669 = vshrl.u32 %v668, 7
        %v670 = vsub.s32 6, %v669
        %v671 = vrot.slane %v466, %v670
        %v674 = vlaneseq
        %v675 = vshrl.u32 %v674, 7
        %v676 = vsub.s32 2, %v675
        %v677 = vrot.slane %v667, %v676
        %v678 = vlaneseq
        %v679 = vshrl.u32 %v678, 7
        %v680 = vsub.s32 2, %v679
        %v681 = vrot.slane %v671, %v680
        %v682 = vmul.f32 %v634, %v677
        %v683 = vmul.f32 %v634, %v681
        %v684 = vmul.f32 %v638, %v677
        %v685 = vmul.f32 %v638, %v681
        %v686 = vmul.f32 %v642, %v677
        %v687 = vmul.f32 %v642, %v681
        %v688 = vmul.f32 %v646, %v677
        %v689 = vmul.f32 %v646, %v681
        %v690 = vmul.f32 %v650, %v677
        %v691 = vmul.f32 %v650, %v681
        %v692 = vmul.f32 %v654, %v677
        %v693 = vmul.f32 %v654, %v681
        %v694 = vmul.f32 %v658, %v677
        %v695 = vmul.f32 %v658, %v681
        %v696 = vmul.f32 %v662, %v677
        %v697 = vmul.f32 %v662, %v681
        %v698 = vadd.f32 %v616, %v682
        %v699 = vadd.f32 %v617, %v683
        %v700 = vadd.f32 %v618, %v684
        %v701 = vadd.f32 %v619, %v685
        %v702 = vadd.f32 %v620, %v686
        %v703 = vadd.f32 %v621, %v687
        %v704 = vadd.f32 %v622, %v688
        %v705 = vadd.f32 %v623, %v689
        %v706 = vadd.f32 %v624, %v690
        %v707 = vadd.f32 %v625, %v691
        %v708 = vadd.f32 %v626, %v692
        %v709 = vadd.f32 %v627, %v693
        %v710 = vadd.f32 %v628, %v694
        %v711 = vadd.f32 %v629, %v695
        %v712 = vadd.f32 %v630, %v696
        %v713 = vadd.f32 %v631, %v697
        %v714 = vld [vmem:[%s2] sm:$0xff]
        %v715 = vld [vmem:[%s2 + $0x8] sm:$0xff]
        %v716 = vld [vmem:[%s2 + $0x10] sm:$0xff]
        %v717 = vld [vmem:[%s2 + $0x18] sm:$0xff]
        %v718 = vld [vmem:[%s2 + $0x20] sm:$0xff]
        %v719 = vld [vmem:[%s2 + $0x28] sm:$0xff]
        %v720 = vld [vmem:[%s2 + $0x30] sm:$0xff]
        %v721 = vld [vmem:[%s2 + $0x38] sm:$0xff]
        %723 = vset.pattern.permute.xlu0 0
        %724 = vperm.xlu0 %723, %v714
        %v725 = vpop.permute.xlu0 %724
        %728 = vset.pattern.permute.xlu0 0
        %729 = vperm.xlu0 %728, %v715
        %v730 = vpop.permute.xlu0 %729
        %733 = vset.pattern.permute.xlu0 0
        %734 = vperm.xlu0 %733, %v716
        %v735 = vpop.permute.xlu0 %734
        %738 = vset.pattern.permute.xlu0 0
        %739 = vperm.xlu0 %738, %v717
        %v740 = vpop.permute.xlu0 %739
        %743 = vset.pattern.permute.xlu0 0
        %744 = vperm.xlu0 %743, %v718
        %v745 = vpop.permute.xlu0 %744
        %748 = vset.pattern.permute.xlu0 0
        %749 = vperm.xlu0 %748, %v719
        %v750 = vpop.permute.xlu0 %749
        %753 = vset.pattern.permute.xlu0 0
        %754 = vperm.xlu0 %753, %v720
        %v755 = vpop.permute.xlu0 %754
        %758 = vset.pattern.permute.xlu0 0
        %759 = vperm.xlu0 %758, %v721
        %v760 = vpop.permute.xlu0 %759
        %v762 = vadd.f32 %v698, %v725
        %v763 = vadd.f32 %v699, %v725
        %v764 = vadd.f32 %v700, %v730
        %v765 = vadd.f32 %v701, %v730
        %v766 = vadd.f32 %v702, %v735
        %v767 = vadd.f32 %v703, %v735
        %v768 = vadd.f32 %v704, %v740
        %v769 = vadd.f32 %v705, %v740
        %v770 = vadd.f32 %v706, %v745
        %v771 = vadd.f32 %v707, %v745
        %v772 = vadd.f32 %v708, %v750
        %v773 = vadd.f32 %v709, %v750
        %v774 = vadd.f32 %v710, %v755
        %v775 = vadd.f32 %v711, %v755
        %v776 = vadd.f32 %v712, %v760
        %v777 = vadd.f32 %v713, %v760
        %v778 = vmax.f32 %v762, 0.0
        %v779 = vmax.f32 %v763, 0.0
        %v780 = vmax.f32 %v764, 0.0
        %v781 = vmax.f32 %v765, 0.0
        %v782 = vmax.f32 %v766, 0.0
        %v783 = vmax.f32 %v767, 0.0
        %v784 = vmax.f32 %v768, 0.0
        %v785 = vmax.f32 %v769, 0.0
        %v786 = vmax.f32 %v770, 0.0
        %v787 = vmax.f32 %v771, 0.0
        %v788 = vmax.f32 %v772, 0.0
        %v789 = vmax.f32 %v773, 0.0
        %v790 = vmax.f32 %v774, 0.0
        %v791 = vmax.f32 %v775, 0.0
        %v792 = vmax.f32 %v776, 0.0
        %v793 = vmax.f32 %v777, 0.0
        %v794 = vld [vmem:[%s3] sm:$0xf]
        %v795 = vld [vmem:[%s4] sm:$0xf]
        %797 = vset.pattern.permute.xlu0 0
        %798 = vperm.xlu0 %797, %v795
        %v799 = vpop.permute.xlu0 %798
        %vm801 = vcmask 261120
        %v803 = vsel %vm801, %v794, 0
        %805 = vmatprep.subr.mxu0 %v779
        %806 = vmatpush1.msra.mxu0 %v778
        %807 = vmatprep.subr.mxu0 %v781
        %808 = vmatpush1.msra.mxu0 %v780
        %809 = vmatprep.subr.mxu0 %v783
        %810 = vmatpush1.msra.mxu0 %v782
        %811 = vmatprep.subr.mxu0 %v785
        %812 = vmatpush1.msra.mxu0 %v784
        %813 = vmatprep.subr.mxu0 0.0
        %814 = vmatpush1.msra.mxu0 0.0
        %815 = vmatprep.subr.mxu0 0.0
        %816 = vmatpush1.msra.mxu0 0.0
        %817 = vmatprep.subr.mxu0 0.0
        %818 = vmatpush1.msra.mxu0 0.0
        %819 = vmatprep.subr.mxu0 0.0
        %820 = vmatpush1.msra.mxu0 0.0
        %821 = vmatprep.subr.mxu0 0.0
        %822 = vmatpush1.msra.mxu0 0.0
        %823 = vmatprep.subr.mxu0 0.0
        %824 = vmatpush1.msra.mxu0 0.0
        %825 = vmatprep.subr.mxu0 0.0
        %826 = vmatpush1.msra.mxu0 0.0
        %827 = vmatprep.subr.mxu0 0.0
        %828 = vmatpush1.msra.mxu0 0.0
        %829 = vmatprep.subr.mxu0 0.0
        %830 = vmatpush1.msra.mxu0 0.0
        %831 = vmatprep.subr.mxu0 0.0
        %832 = vmatpush1.msra.mxu0 0.0
        %833 = vmatprep.subr.mxu0 0.0
        %834 = vmatpush1.msra.mxu0 0.0
        %835 = vmatprep.subr.mxu0 0.0
        %836 = vmatpush1.msra.mxu0 0.0
        %837 = vmatprep.subr.mxu0 0.0
        %838 = vmatpush1.msra.mxu0 0.0
        %839 = vmatprep.subr.mxu0 0.0
        %840 = vmatpush1.msra.mxu0 0.0
        %841 = vmatprep.subr.mxu0 0.0
        %842 = vmatpush1.msra.mxu0 0.0
        %843 = vmatprep.subr.mxu0 0.0
        %844 = vmatpush1.msra.mxu0 0.0
        %845 = vmatprep.subr.mxu0 0.0
        %846 = vmatpush1.msra.mxu0 0.0
        %847 = vmatprep.subr.mxu0 0.0
        %848 = vmatpush1.msra.mxu0 0.0
        %849 = vmatprep.subr.mxu0 0.0
        %850 = vmatpush1.msra.mxu0 0.0
        %851 = vmatprep.subr.mxu0 0.0
        %852 = vmatpush1.msra.mxu0 0.0
        %853 = vmatprep.subr.mxu0 0.0
        %854 = vmatpush1.msra.mxu0 0.0
        %855 = vmatprep.subr.mxu0 0.0
        %856 = vmatpush1.msra.mxu0 0.0
        %857 = vmatprep.subr.mxu0 0.0
        %858 = vmatpush1.msra.mxu0 0.0
        %859 = vmatprep.subr.mxu0 0.0
        %860 = vmatpush1.msra.mxu0 0.0
        %861 = vmatprep.subr.mxu0 0.0
        %862 = vmatpush1.msra.mxu0 0.0
        %863 = vmatprep.subr.mxu0 0.0
        %864 = vmatpush1.msra.mxu0 0.0
        %865 = vmatprep.subr.mxu0 0.0
        %866 = vmatpush1.msra.mxu0 0.0
        %867 = vmatprep.subr.mxu0 0.0
        %868 = vmatpush1.msra.mxu0 0.0
        %869 = vmatprep.mubr.f32.mxu0 0.0
        %870 = vmatmul.mubr.f32.gmra.mrb[0].mxu0 %v803
        %v871 = vpop.f32.mrb[0].mxu0
        %v872 = vadd.f32 %v799, %v871
        %v873 = vpop.f32.mrb[0].mxu0
        %v874 = vadd.f32 %v799, %v873
        %875 = vdwg.mxu0
        %vm876 = vcmask 1043456
        %v877 = vsel %vm876, %v872, -inf
        %v878 = vrot.slane %v877, 4
        %v879 = vmax.f32 %v877, %v878
        %v880 = vrot.slane %v879, 2
        %v881 = vmax.f32 %v879, %v880
        %v882 = vrot.slane %v881, 1
        %v883 = vmax.f32 %v881, %v882
        %v884 = vsel %vm876, %v874, -inf
        %v885 = vrot.slane %v884, 4
        %v886 = vmax.f32 %v884, %v885
        %v887 = vrot.slane %v886, 2
        %v888 = vmax.f32 %v886, %v887
        %v889 = vrot.slane %v888, 1
        %v890 = vmax.f32 %v888, %v889
        %v891 = vsub.f32 %v872, %v883
        %v892 = vsub.f32 %v874, %v890
        %v893 = vmul.f32 %v891, 1.442695
        %v894 = vpow.pop %v893
        %v895 = vmul.f32 %v892, 1.442695
        %v896 = vpow.pop %v895
        %v897 = vsel %vm876, %v894, 0.0
        %v898 = vrot.slane %v897, 4
        %v899 = vadd.f32 %v897, %v898
        %v900 = vrot.slane %v899, 2
        %v901 = vadd.f32 %v899, %v900
        %v902 = vrot.slane %v901, 1
        %v903 = vadd.f32 %v901, %v902
        %v904 = vsel %vm876, %v896, 0.0
        %v905 = vrot.slane %v904, 4
        %v906 = vadd.f32 %v904, %v905
        %v907 = vrot.slane %v906, 2
        %v908 = vadd.f32 %v906, %v907
        %v909 = vrot.slane %v908, 1
        %v910 = vadd.f32 %v908, %v909
        %v911 = vrcp.pop %v903
        %v912 = vrcp.pop %v910
        %v913 = vmul.f32 %v894, %v911
        %v914 = vmul.f32 %v896, %v912
        %v915 = vld [vmem:[%s5] sm:$0x3]
        %v916 = vld [vmem:[%s6] sm:$0x3]
        %918 = vset.pattern.permute.xlu0 0
        %919 = vperm.xlu0 %918, %v916
        %v920 = vpop.permute.xlu0 %919
        %v923 = vsel %vm801, %v915, 0
        %925 = vmatprep.subr.mxu0 %v787
        %926 = vmatpush1.msra.mxu0 %v786
        %927 = vmatprep.subr.mxu0 %v789
        %928 = vmatpush1.msra.mxu0 %v788
        %929 = vmatprep.subr.mxu0 %v791
        %930 = vmatpush1.msra.mxu0 %v790
        %931 = vmatprep.subr.mxu0 %v793
        %932 = vmatpush1.msra.mxu0 %v792
        %933 = vmatprep.subr.mxu0 0.0
        %934 = vmatpush1.msra.mxu0 0.0
        %935 = vmatprep.subr.mxu0 0.0
        %936 = vmatpush1.msra.mxu0 0.0
        %937 = vmatprep.subr.mxu0 0.0
        %938 = vmatpush1.msra.mxu0 0.0
        %939 = vmatprep.subr.mxu0 0.0
        %940 = vmatpush1.msra.mxu0 0.0
        %941 = vmatprep.subr.mxu0 0.0
        %942 = vmatpush1.msra.mxu0 0.0
        %943 = vmatprep.subr.mxu0 0.0
        %944 = vmatpush1.msra.mxu0 0.0
        %945 = vmatprep.subr.mxu0 0.0
        %946 = vmatpush1.msra.mxu0 0.0
        %947 = vmatprep.subr.mxu0 0.0
        %948 = vmatpush1.msra.mxu0 0.0
        %949 = vmatprep.subr.mxu0 0.0
        %950 = vmatpush1.msra.mxu0 0.0
        %951 = vmatprep.subr.mxu0 0.0
        %952 = vmatpush1.msra.mxu0 0.0
        %953 = vmatprep.subr.mxu0 0.0
        %954 = vmatpush1.msra.mxu0 0.0
        %955 = vmatprep.subr.mxu0 0.0
        %956 = vmatpush1.msra.mxu0 0.0
        %957 = vmatprep.subr.mxu0 0.0
        %958 = vmatpush1.msra.mxu0 0.0
        %959 = vmatprep.subr.mxu0 0.0
        %960 = vmatpush1.msra.mxu0 0.0
        %961 = vmatprep.subr.mxu0 0.0
        %962 = vmatpush1.msra.mxu0 0.0
        %963 = vmatprep.subr.mxu0 0.0
        %964 = vmatpush1.msra.mxu0 0.0
        %965 = vmatprep.subr.mxu0 0.0
        %966 = vmatpush1.msra.mxu0 0.0
        %967 = vmatprep.subr.mxu0 0.0
        %968 = vmatpush1.msra.mxu0 0.0
        %969 = vmatprep.subr.mxu0 0.0
        %970 = vmatpush1.msra.mxu0 0.0
        %971 = vmatprep.subr.mxu0 0.0
        %972 = vmatpush1.msra.mxu0 0.0
        %973 = vmatprep.subr.mxu0 0.0
        %974 = vmatpush1.msra.mxu0 0.0
        %975 = vmatprep.subr.mxu0 0.0
        %976 = vmatpush1.msra.mxu0 0.0
        %977 = vmatprep.subr.mxu0 0.0
        %978 = vmatpush1.msra.mxu0 0.0
        %979 = vmatprep.subr.mxu0 0.0
        %980 = vmatpush1.msra.mxu0 0.0
        %981 = vmatprep.subr.mxu0 0.0
        %982 = vmatpush1.msra.mxu0 0.0
        %983 = vmatprep.subr.mxu0 0.0
        %984 = vmatpush1.msra.mxu0 0.0
        %985 = vmatprep.subr.mxu0 0.0
        %986 = vmatpush1.msra.mxu0 0.0
        %987 = vmatprep.subr.mxu0 0.0
        %988 = vmatpush1.msra.mxu0 0.0
        %989 = vmatprep.mubr.f32.mxu0 0.0
        %990 = vmatmul.mubr.f32.gmra.mrb[0].mxu0 %v923
        %v991 = vpop.f32.mrb[0].mxu0
        %v992 = vadd.f32 %v920, %v991
        %v993 = vpop.f32.mrb[0].mxu0
        %v994 = vadd.f32 %v920, %v993
        %995 = vdwg.mxu0
        %v996 = vtanh.pop %v992
        %v997 = vtanh.pop %v994
        %v998 = vmul.f32 %v996, 0.9
        %v999 = vmul.f32 %v997, 0.9
        %v1000 = vadd.f32 %v998, 1.0
        %v1001 = vadd.f32 %v999, 1.0
        %v1002 = vmul.f32 %v1000, 16.0
        %v1003 = vmul.f32 %v1001, 16.0
        %v1004 = vsub.f32 %v1002, 1.0
        %v1005 = vsub.f32 %v1003, 1.0
        %v1006 = vmul.f32 %v1004, 0.5
        %v1007 = vmul.f32 %v1005, 0.5
        %v1008 = vfloor.f32 %v1006
        %v1009 = vfloor.f32 %v1007
        %v1010 = vsub.f32 %v1006, %v1008
        %v1011 = vsub.f32 %v1007, %v1009
        %v1012 = vsub.f32 1.0, %v1010
        %v1013 = vsub.f32 1.0, %v1011
        %v1014 = vcvt.f32.s32.to.zero.pseudo %v1008
        %v1015 = vcvt.f32.s32.to.zero.pseudo %v1009
        %v1016 = vlaneseq
        %v1017 = vshrl.u32 %v1016, 7
        %v1018 = vadd.s32 %v1017, 8
        %v1019 = vlaneseq
        %v1020 = vshrl.u32 %v1019, 7
        %v1021 = vsub.s32 0, %v1020
        %v1022 = vrot.slane %v1014, %v1021
        %v1023 = vlaneseq
        %v1024 = vshrl.u32 %v1023, 7
        %v1025 = vsub.s32 0, %v1024
        %v1026 = vrot.slane %v1015, %v1025
        %vm1027 = vcmp.eq.s32.totalorder %v1017, %v1022
        %vm1028 = vcmp.eq.s32.totalorder %v1017, %v1026
        %vm1029 = vcmp.eq.s32.totalorder %v1018, %v1022
        %vm1030 = vcmp.eq.s32.totalorder %v1018, %v1026
        %v1031 = vlaneseq
        %v1032 = vshrl.u32 %v1031, 7
        %v1033 = vsub.s32 0, %v1032
        %v1034 = vrot.slane %v1012, %v1033
        %v1035 = vlaneseq
        %v1036 = vshrl.u32 %v1035, 7
        %v1037 = vsub.s32 0, %v1036
        %v1038 = vrot.slane %v1013, %v1037
        %v1039 = vsel %vm1027, %v1034, 0.0
        %v1040 = vsel %vm1028, %v1038, 0.0
        %v1041 = vsel %vm1029, %v1034, 0.0
        %v1042 = vsel %vm1030, %v1038, 0.0
        %v1043 = vadd.s32 %v1014, 1
        %v1044 = vadd.s32 %v1015, 1
        %v1045 = vlaneseq
        %v1046 = vshrl.u32 %v1045, 7
        %v1047 = vsub.s32 0, %v1046
        %v1048 = vrot.slane %v1043, %v1047
        %v1049 = vlaneseq
        %v1050 = vshrl.u32 %v1049, 7
        %v1051 = vsub.s32 0, %v1050
        %v1052 = vrot.slane %v1044, %v1051
        %vm1053 = vcmp.eq.s32.totalorder %v1017, %v1048
        %vm1054 = vcmp.eq.s32.totalorder %v1017, %v1052
        %vm1055 = vcmp.eq.s32.totalorder %v1018, %v1048
        %vm1056 = vcmp.eq.s32.totalorder %v1018, %v1052
        %v1057 = vlaneseq
        %v1058 = vshrl.u32 %v1057, 7
        %v1059 = vsub.s32 0, %v1058
        %v1060 = vrot.slane %v1010, %v1059
        %v1061 = vlaneseq
        %v1062 = vshrl.u32 %v1061, 7
        %v1063 = vsub.s32 0, %v1062
        %v1064 = vrot.slane %v1011, %v1063
        %v1065 = vsel %vm1053, %v1060, 0.0
        %v1066 = vsel %vm1054, %v1064, 0.0
        %v1067 = vsel %vm1055, %v1060, 0.0
        %v1068 = vsel %vm1056, %v1064, 0.0
        %v1069 = vadd.f32 %v1039, %v1065
        %v1070 = vadd.f32 %v1040, %v1066
        %v1071 = vadd.f32 %v1041, %v1067
        %v1072 = vadd.f32 %v1042, %v1068
        %v1073 = vlaneseq
        %v1074 = vshrl.u32 %v1073, 7
        %v1075 = vsub.s32 1, %v1074
        %v1076 = vrot.slane %v1014, %v1075
        %v1077 = vlaneseq
        %v1078 = vshrl.u32 %v1077, 7
        %v1079 = vsub.s32 1, %v1078
        %v1080 = vrot.slane %v1015, %v1079
        %vm1081 = vcmp.eq.s32.totalorder %v1017, %v1076
        %vm1082 = vcmp.eq.s32.totalorder %v1017, %v1080
        %vm1083 = vcmp.eq.s32.totalorder %v1018, %v1076
        %vm1084 = vcmp.eq.s32.totalorder %v1018, %v1080
        %v1085 = vlaneseq
        %v1086 = vshrl.u32 %v1085, 7
        %v1087 = vsub.s32 1, %v1086
        %v1088 = vrot.slane %v1012, %v1087
        %v1089 = vlaneseq
        %v1090 = vshrl.u32 %v1089, 7
        %v1091 = vsub.s32 1, %v1090
        %v1092 = vrot.slane %v1013, %v1091
        %v1093 = vsel %vm1081, %v1088, 0.0
        %v1094 = vsel %vm1082, %v1092, 0.0
        %v1095 = vsel %vm1083, %v1088, 0.0
        %v1096 = vsel %vm1084, %v1092, 0.0
        %v1097 = vlaneseq
        %v1098 = vshrl.u32 %v1097, 7
        %v1099 = vsub.s32 1, %v1098
        %v1100 = vrot.slane %v1043, %v1099
        %v1101 = vlaneseq
        %v1102 = vshrl.u32 %v1101, 7
        %v1103 = vsub.s32 1, %v1102
        %v1104 = vrot.slane %v1044, %v1103
        %vm1105 = vcmp.eq.s32.totalorder %v1017, %v1100
        %vm1106 = vcmp.eq.s32.totalorder %v1017, %v1104
        %vm1107 = vcmp.eq.s32.totalorder %v1018, %v1100
        %vm1108 = vcmp.eq.s32.totalorder %v1018, %v1104
        %v1109 = vlaneseq
        %v1110 = vshrl.u32 %v1109, 7
        %v1111 = vsub.s32 1, %v1110
        %v1112 = vrot.slane %v1010, %v1111
        %v1113 = vlaneseq
        %v1114 = vshrl.u32 %v1113, 7
        %v1115 = vsub.s32 1, %v1114
        %v1116 = vrot.slane %v1011, %v1115
        %v1117 = vsel %vm1105, %v1112, 0.0
        %v1118 = vsel %vm1106, %v1116, 0.0
        %v1119 = vsel %vm1107, %v1112, 0.0
        %v1120 = vsel %vm1108, %v1116, 0.0
        %v1121 = vadd.f32 %v1093, %v1117
        %v1122 = vadd.f32 %v1094, %v1118
        %v1123 = vadd.f32 %v1095, %v1119
        %v1124 = vadd.f32 %v1096, %v1120
        %v1129 = vcombine.low %v1121, %v1122
        %v1130 = vcombine.high %v1121, %v1122
        %v1132 = vunpack.c.l.s4 1966171168
        %v1133 = vunpack.c.0.s8 %v1132
        %v1134 = vlaneseq
        %v1135 = vshrl.u32 %v1134, 7
        %v1136 = vsub.s32 %v1133, %v1135
        %v1137 = vrot.slane %v1129, %v1136
        %v1139 = vunpack.c.l.s4 1966171168
        %v1140 = vunpack.c.0.s8 %v1139
        %v1141 = vlaneseq
        %v1142 = vshrl.u32 %v1141, 7
        %v1143 = vsub.s32 %v1140, %v1142
        %v1144 = vrot.slane %v1130, %v1143
        %v1145 = vcombine.high %v1137, %v1137
        %v1146 = vcombine.high %v1144, %v1144
        %v1148 = vunpack.c.l.s4 1966171168
        %v1149 = vunpack.c.0.s8 %v1148
        %v1150 = vlaneseq
        %v1151 = vshrl.u32 %v1150, 7
        %v1152 = vsub.s32 %v1149, %v1151
        %v1153 = vrot.slane %v1137, %v1152
        %v1155 = vunpack.c.l.s4 1966171168
        %v1156 = vunpack.c.0.s8 %v1155
        %v1157 = vlaneseq
        %v1158 = vshrl.u32 %v1157, 7
        %v1159 = vsub.s32 %v1156, %v1158
        %v1160 = vrot.slane %v1144, %v1159
        %v1162 = vunpack.c.l.s4 1966171168
        %v1163 = vunpack.c.0.s8 %v1162
        %v1164 = vlaneseq
        %v1165 = vshrl.u32 %v1164, 7
        %v1166 = vsub.s32 %v1163, %v1165
        %v1167 = vrot.slane %v1145, %v1166
        %v1169 = vunpack.c.l.s4 1966171168
        %v1170 = vunpack.c.0.s8 %v1169
        %v1171 = vlaneseq
        %v1172 = vshrl.u32 %v1171, 7
        %v1173 = vsub.s32 %v1170, %v1172
        %v1174 = vrot.slane %v1146, %v1173
        %v1175 = vcombine.high %v1153, %v1153
        %v1176 = vcombine.high %v1160, %v1160
        %v1177 = vcombine.high %v1167, %v1167
        %v1178 = vcombine.high %v1174, %v1174
        %v1179 = vcombine.low %v1123, %v1124
        %v1180 = vcombine.high %v1123, %v1124
        %v1182 = vunpack.c.l.s4 1966171168
        %v1183 = vunpack.c.0.s8 %v1182
        %v1184 = vlaneseq
        %v1185 = vshrl.u32 %v1184, 7
        %v1186 = vsub.s32 %v1183, %v1185
        %v1187 = vrot.slane %v1179, %v1186
        %v1189 = vunpack.c.l.s4 1966171168
        %v1190 = vunpack.c.0.s8 %v1189
        %v1191 = vlaneseq
        %v1192 = vshrl.u32 %v1191, 7
        %v1193 = vsub.s32 %v1190, %v1192
        %v1194 = vrot.slane %v1180, %v1193
        %v1195 = vcombine.high %v1187, %v1187
        %v1196 = vcombine.high %v1194, %v1194
        %v1198 = vunpack.c.l.s4 1966171168
        %v1199 = vunpack.c.0.s8 %v1198
        %v1200 = vlaneseq
        %v1201 = vshrl.u32 %v1200, 7
        %v1202 = vsub.s32 %v1199, %v1201
        %v1203 = vrot.slane %v1187, %v1202
        %v1205 = vunpack.c.l.s4 1966171168
        %v1206 = vunpack.c.0.s8 %v1205
        %v1207 = vlaneseq
        %v1208 = vshrl.u32 %v1207, 7
        %v1209 = vsub.s32 %v1206, %v1208
        %v1210 = vrot.slane %v1194, %v1209
        %v1212 = vunpack.c.l.s4 1966171168
        %v1213 = vunpack.c.0.s8 %v1212
        %v1214 = vlaneseq
        %v1215 = vshrl.u32 %v1214, 7
        %v1216 = vsub.s32 %v1213, %v1215
        %v1217 = vrot.slane %v1195, %v1216
        %v1219 = vunpack.c.l.s4 1966171168
        %v1220 = vunpack.c.0.s8 %v1219
        %v1221 = vlaneseq
        %v1222 = vshrl.u32 %v1221, 7
        %v1223 = vsub.s32 %v1220, %v1222
        %v1224 = vrot.slane %v1196, %v1223
        %v1225 = vcombine.high %v1203, %v1203
        %v1226 = vcombine.high %v1210, %v1210
        %v1227 = vcombine.high %v1217, %v1217
        %v1228 = vcombine.high %v1224, %v1224
        %v1229 = vlaneseq
        %v1230 = vshrl.u32 %v1229, 7
        %v1231 = vsub.s32 0, %v1230
        %v1232 = vrot.slane %v1153, %v1231
        %v1233 = vlaneseq
        %v1234 = vshrl.u32 %v1233, 7
        %v1235 = vsub.s32 1, %v1234
        %v1236 = vrot.slane %v1153, %v1235
        %v1237 = vlaneseq
        %v1238 = vshrl.u32 %v1237, 7
        %v1239 = vsub.s32 0, %v1238
        %v1240 = vrot.slane %v1167, %v1239
        %v1241 = vlaneseq
        %v1242 = vshrl.u32 %v1241, 7
        %v1243 = vsub.s32 1, %v1242
        %v1244 = vrot.slane %v1167, %v1243
        %v1245 = vlaneseq
        %v1246 = vshrl.u32 %v1245, 7
        %v1247 = vsub.s32 0, %v1246
        %v1248 = vrot.slane %v1175, %v1247
        %v1249 = vlaneseq
        %v1250 = vshrl.u32 %v1249, 7
        %v1251 = vsub.s32 1, %v1250
        %v1252 = vrot.slane %v1175, %v1251
        %v1253 = vlaneseq
        %v1254 = vshrl.u32 %v1253, 7
        %v1255 = vsub.s32 0, %v1254
        %v1256 = vrot.slane %v1177, %v1255
        %v1257 = vlaneseq
        %v1258 = vshrl.u32 %v1257, 7
        %v1259 = vsub.s32 1, %v1258
        %v1260 = vrot.slane %v1177, %v1259
        %v1261 = vlaneseq
        %v1262 = vshrl.u32 %v1261, 7
        %v1263 = vsub.s32 0, %v1262
        %v1264 = vrot.slane %v1160, %v1263
        %v1265 = vlaneseq
        %v1266 = vshrl.u32 %v1265, 7
        %v1267 = vsub.s32 1, %v1266
        %v1268 = vrot.slane %v1160, %v1267
        %v1269 = vlaneseq
        %v1270 = vshrl.u32 %v1269, 7
        %v1271 = vsub.s32 0, %v1270
        %v1272 = vrot.slane %v1174, %v1271
        %v1273 = vlaneseq
        %v1274 = vshrl.u32 %v1273, 7
        %v1275 = vsub.s32 1, %v1274
        %v1276 = vrot.slane %v1174, %v1275
        %v1277 = vlaneseq
        %v1278 = vshrl.u32 %v1277, 7
        %v1279 = vsub.s32 0, %v1278
        %v1280 = vrot.slane %v1176, %v1279
        %v1281 = vlaneseq
        %v1282 = vshrl.u32 %v1281, 7
        %v1283 = vsub.s32 1, %v1282
        %v1284 = vrot.slane %v1176, %v1283
        %v1285 = vlaneseq
        %v1286 = vshrl.u32 %v1285, 7
        %v1287 = vsub.s32 0, %v1286
        %v1288 = vrot.slane %v1178, %v1287
        %v1289 = vlaneseq
        %v1290 = vshrl.u32 %v1289, 7
        %v1291 = vsub.s32 1, %v1290
        %v1292 = vrot.slane %v1178, %v1291
        %v1293 = vlaneseq
        %v1294 = vshrl.u32 %v1293, 7
        %v1295 = vsub.s32 0, %v1294
        %v1296 = vrot.slane %v1203, %v1295
        %v1297 = vlaneseq
        %v1298 = vshrl.u32 %v1297, 7
        %v1299 = vsub.s32 1, %v1298
        %v1300 = vrot.slane %v1203, %v1299
        %v1301 = vlaneseq
        %v1302 = vshrl.u32 %v1301, 7
        %v1303 = vsub.s32 0, %v1302
        %v1304 = vrot.slane %v1217, %v1303
        %v1305 = vlaneseq
        %v1306 = vshrl.u32 %v1305, 7
        %v1307 = vsub.s32 1, %v1306
        %v1308 = vrot.slane %v1217, %v1307
        %v1309 = vlaneseq
        %v1310 = vshrl.u32 %v1309, 7
        %v1311 = vsub.s32 0, %v1310
        %v1312 = vrot.slane %v1225, %v1311
        %v1313 = vlaneseq
        %v1314 = vshrl.u32 %v1313, 7
        %v1315 = vsub.s32 1, %v1314
        %v1316 = vrot.slane %v1225, %v1315
        %v1317 = vlaneseq
        %v1318 = vshrl.u32 %v1317, 7
        %v1319 = vsub.s32 0, %v1318
        %v1320 = vrot.slane %v1227, %v1319
        %v1321 = vlaneseq
        %v1322 = vshrl.u32 %v1321, 7
        %v1323 = vsub.s32 1, %v1322
        %v1324 = vrot.slane %v1227, %v1323
        %v1325 = vlaneseq
        %v1326 = vshrl.u32 %v1325, 7
        %v1327 = vsub.s32 0, %v1326
        %v1328 = vrot.slane %v1210, %v1327
        %v1329 = vlaneseq
        %v1330 = vshrl.u32 %v1329, 7
        %v1331 = vsub.s32 1, %v1330
        %v1332 = vrot.slane %v1210, %v1331
        %v1333 = vlaneseq
        %v1334 = vshrl.u32 %v1333, 7
        %v1335 = vsub.s32 0, %v1334
        %v1336 = vrot.slane %v1224, %v1335
        %v1337 = vlaneseq
        %v1338 = vshrl.u32 %v1337, 7
        %v1339 = vsub.s32 1, %v1338
        %v1340 = vrot.slane %v1224, %v1339
        %v1341 = vlaneseq
        %v1342 = vshrl.u32 %v1341, 7
        %v1343 = vsub.s32 0, %v1342
        %v1344 = vrot.slane %v1226, %v1343
        %v1345 = vlaneseq
        %v1346 = vshrl.u32 %v1345, 7
        %v1347 = vsub.s32 1, %v1346
        %v1348 = vrot.slane %v1226, %v1347
        %v1349 = vlaneseq
        %v1350 = vshrl.u32 %v1349, 7
        %v1351 = vsub.s32 0, %v1350
        %v1352 = vrot.slane %v1228, %v1351
        %v1353 = vlaneseq
        %v1354 = vshrl.u32 %v1353, 7
        %v1355 = vsub.s32 1, %v1354
        %v1356 = vrot.slane %v1228, %v1355
        %v1389 = vmul.f32 %v1232, %v1069
        %v1390 = vmul.f32 %v1236, %v1070
        %v1391 = vmul.f32 %v1232, %v1071
        %v1392 = vmul.f32 %v1236, %v1072
        %v1393 = vmul.f32 %v1240, %v1069
        %v1394 = vmul.f32 %v1244, %v1070
        %v1395 = vmul.f32 %v1240, %v1071
        %v1396 = vmul.f32 %v1244, %v1072
        %v1397 = vmul.f32 %v1248, %v1069
        %v1398 = vmul.f32 %v1252, %v1070
        %v1399 = vmul.f32 %v1248, %v1071
        %v1400 = vmul.f32 %v1252, %v1072
        %v1401 = vmul.f32 %v1256, %v1069
        %v1402 = vmul.f32 %v1260, %v1070
        %v1403 = vmul.f32 %v1256, %v1071
        %v1404 = vmul.f32 %v1260, %v1072
        %v1405 = vmul.f32 %v1264, %v1069
        %v1406 = vmul.f32 %v1268, %v1070
        %v1407 = vmul.f32 %v1264, %v1071
        %v1408 = vmul.f32 %v1268, %v1072
        %v1409 = vmul.f32 %v1272, %v1069
        %v1410 = vmul.f32 %v1276, %v1070
        %v1411 = vmul.f32 %v1272, %v1071
        %v1412 = vmul.f32 %v1276, %v1072
        %v1413 = vmul.f32 %v1280, %v1069
        %v1414 = vmul.f32 %v1284, %v1070
        %v1415 = vmul.f32 %v1280, %v1071
        %v1416 = vmul.f32 %v1284, %v1072
        %v1417 = vmul.f32 %v1288, %v1069
        %v1418 = vmul.f32 %v1292, %v1070
        %v1419 = vmul.f32 %v1288, %v1071
        %v1420 = vmul.f32 %v1292, %v1072
        %v1421 = vmul.f32 %v1296, %v1069
        %v1422 = vmul.f32 %v1300, %v1070
        %v1423 = vmul.f32 %v1296, %v1071
        %v1424 = vmul.f32 %v1300, %v1072
        %v1425 = vmul.f32 %v1304, %v1069
        %v1426 = vmul.f32 %v1308, %v1070
        %v1427 = vmul.f32 %v1304, %v1071
        %v1428 = vmul.f32 %v1308, %v1072
        %v1429 = vmul.f32 %v1312, %v1069
        %v1430 = vmul.f32 %v1316, %v1070
        %v1431 = vmul.f32 %v1312, %v1071
        %v1432 = vmul.f32 %v1316, %v1072
        %v1433 = vmul.f32 %v1320, %v1069
        %v1434 = vmul.f32 %v1324, %v1070
        %v1435 = vmul.f32 %v1320, %v1071
        %v1436 = vmul.f32 %v1324, %v1072
        %v1437 = vmul.f32 %v1328, %v1069
        %v1438 = vmul.f32 %v1332, %v1070
        %v1439 = vmul.f32 %v1328, %v1071
        %v1440 = vmul.f32 %v1332, %v1072
        %v1441 = vmul.f32 %v1336, %v1069
        %v1442 = vmul.f32 %v1340, %v1070
        %v1443 = vmul.f32 %v1336, %v1071
        %v1444 = vmul.f32 %v1340, %v1072
        %v1445 = vmul.f32 %v1344, %v1069
        %v1446 = vmul.f32 %v1348, %v1070
        %v1447 = vmul.f32 %v1344, %v1071
        %v1448 = vmul.f32 %v1348, %v1072
        %v1449 = vmul.f32 %v1352, %v1069
        %v1450 = vmul.f32 %v1356, %v1070
        %v1451 = vmul.f32 %v1352, %v1071
        %v1452 = vmul.f32 %v1356, %v1072
        %v1453 = vpack.c.bf16 %v1391, %v1389
        %v1454 = vpack.c.bf16 %v1392, %v1390
        %v1455 = vpack.c.bf16 %v1395, %v1393
        %v1456 = vpack.c.bf16 %v1396, %v1394
        %v1457 = vpack.c.bf16 %v1399, %v1397
        %v1458 = vpack.c.bf16 %v1400, %v1398
        %v1459 = vpack.c.bf16 %v1403, %v1401
        %v1460 = vpack.c.bf16 %v1404, %v1402
        %v1461 = vpack.c.bf16 %v1407, %v1405
        %v1462 = vpack.c.bf16 %v1408, %v1406
        %v1463 = vpack.c.bf16 %v1411, %v1409
        %v1464 = vpack.c.bf16 %v1412, %v1410
        %v1465 = vpack.c.bf16 %v1415, %v1413
        %v1466 = vpack.c.bf16 %v1416, %v1414
        %v1467 = vpack.c.bf16 %v1419, %v1417
        %v1468 = vpack.c.bf16 %v1420, %v1418
        %v1469 = vpack.c.bf16 %v1423, %v1421
        %v1470 = vpack.c.bf16 %v1424, %v1422
        %v1471 = vpack.c.bf16 %v1427, %v1425
        %v1472 = vpack.c.bf16 %v1428, %v1426
        %v1473 = vpack.c.bf16 %v1431, %v1429
        %v1474 = vpack.c.bf16 %v1432, %v1430
        %v1475 = vpack.c.bf16 %v1435, %v1433
        %v1476 = vpack.c.bf16 %v1436, %v1434
        %v1477 = vpack.c.bf16 %v1439, %v1437
        %v1478 = vpack.c.bf16 %v1440, %v1438
        %v1479 = vpack.c.bf16 %v1443, %v1441
        %v1480 = vpack.c.bf16 %v1444, %v1442
        %v1481 = vpack.c.bf16 %v1447, %v1445
        %v1482 = vpack.c.bf16 %v1448, %v1446
        %v1483 = vpack.c.bf16 %v1451, %v1449
        %v1484 = vpack.c.bf16 %v1452, %v1450
        %v1485 = vld [vmem:[%s403] sm:$0xff]
        %v1486 = vld [vmem:[%s403 + $0x8] sm:$0xff]
        %v1487 = vld [vmem:[%s403 + $0x10] sm:$0xff]
        %v1488 = vld [vmem:[%s403 + $0x18] sm:$0xff]
        %v1489 = vld [vmem:[%s403 + $0x20] sm:$0xff]
        %v1490 = vld [vmem:[%s403 + $0x28] sm:$0xff]
        %v1491 = vld [vmem:[%s403 + $0x30] sm:$0xff]
        %v1492 = vld [vmem:[%s403 + $0x38] sm:$0xff]
        %v1493 = vld [vmem:[%s8] sm:$0xff]
        %v1494 = vld [vmem:[%s8 + $0x8] sm:$0xff]
        %v1495 = vld [vmem:[%s8 + $0x10] sm:$0xff]
        %v1496 = vld [vmem:[%s8 + $0x18] sm:$0xff]
        %v1497 = vld [vmem:[#allocation2] sm:$0xff]
        %v1498 = vld [vmem:[#allocation2 + $0x8] sm:$0xff]
        %v1499 = vld [vmem:[#allocation2 + $0x10] sm:$0xff]
        %v1500 = vld [vmem:[#allocation2 + $0x18] sm:$0xff]
        %v1505 = vunpack.c.l.b16 %v1497
        %v1506 = vunpack.c.h.b16 %v1497
        %v1507 = vunpack.c.l.b16 %v1498
        %v1508 = vunpack.c.h.b16 %v1498
        %v1509 = vunpack.c.l.b16 %v1499
        %v1510 = vunpack.c.h.b16 %v1499
        %v1511 = vunpack.c.l.b16 %v1500
        %v1512 = vunpack.c.h.b16 %v1500
        %v1513 = vpack.c.b16 %v1507, %v1505
        %v1514 = vpack.c.b16 %v1508, %v1506
        %v1515 = vpack.c.b16 %v1511, %v1509
        %v1516 = vpack.c.b16 %v1512, %v1510
        %1521 = vmatprep.subr.bf16.mxu0 %v1454
        %1522 = vmatpush1.bf16.msra.mxu0 %v1453
        %1523 = vmatprep.subr.bf16.mxu0 %v1456
        %1524 = vmatpush1.bf16.msra.mxu0 %v1455
        %1525 = vmatprep.subr.bf16.mxu0 %v1458
        %1526 = vmatpush1.bf16.msra.mxu0 %v1457
        %1527 = vmatprep.subr.bf16.mxu0 %v1460
        %1528 = vmatpush1.bf16.msra.mxu0 %v1459
        %1529 = vmatprep.subr.bf16.mxu0 %v1462
        %1530 = vmatpush1.bf16.msra.mxu0 %v1461
        %1531 = vmatprep.subr.bf16.mxu0 %v1464
        %1532 = vmatpush1.bf16.msra.mxu0 %v1463
        %1533 = vmatprep.subr.bf16.mxu0 %v1466
        %1534 = vmatpush1.bf16.msra.mxu0 %v1465
        %1535 = vmatprep.subr.bf16.mxu0 %v1468
        %1536 = vmatpush1.bf16.msra.mxu0 %v1467
        %1537 = vmatprep.subr.bf16.mxu0 %v1470
        %1538 = vmatpush1.bf16.msra.mxu0 %v1469
        %1539 = vmatprep.subr.bf16.mxu0 %v1472
        %1540 = vmatpush1.bf16.msra.mxu0 %v1471
        %1541 = vmatprep.subr.bf16.mxu0 %v1474
        %1542 = vmatpush1.bf16.msra.mxu0 %v1473
        %1543 = vmatprep.subr.bf16.mxu0 %v1476
        %1544 = vmatpush1.bf16.msra.mxu0 %v1475
        %1545 = vmatprep.subr.bf16.mxu0 %v1478
        %1546 = vmatpush1.bf16.msra.mxu0 %v1477
        %1547 = vmatprep.subr.bf16.mxu0 %v1480
        %1548 = vmatpush1.bf16.msra.mxu0 %v1479
        %1549 = vmatprep.subr.bf16.mxu0 %v1482
        %1550 = vmatpush1.bf16.msra.mxu0 %v1481
        %1551 = vmatprep.subr.bf16.mxu0 %v1484
        %1552 = vmatpush1.bf16.msra.mxu0 %v1483
        %1553 = vmatprep.mubr.bf16.mxu0 %v1514
        %1554 = vmatmul.mubr.bf16.gmra.mrb[0].mxu0 %v1513
        %v1555 = vpop.f32.mrb[0].mxu0
        %v1556 = vadd.f32 0.0, %v1555
        %v1557 = vpop.f32.mrb[0].mxu0
        %v1558 = vadd.f32 0.0, %v1557
        %v1559 = vpop.f32.mrb[0].mxu0
        %v1560 = vadd.f32 0.0, %v1559
        %v1561 = vpop.f32.mrb[0].mxu0
        %v1562 = vadd.f32 0.0, %v1561
        %1563 = vmatprep.mubr.bf16.mxu0 %v1516
        %1564 = vmatmul.mubr.bf16.gmra.mrb[0].mxu0 %v1515
        %v1565 = vpop.f32.mrb[0].mxu0
        %v1566 = vadd.f32 0.0, %v1565
        %v1567 = vpop.f32.mrb[0].mxu0
        %v1568 = vadd.f32 0.0, %v1567
        %v1569 = vpop.f32.mrb[0].mxu0
        %v1570 = vadd.f32 0.0, %v1569
        %v1571 = vpop.f32.mrb[0].mxu0
        %v1572 = vadd.f32 0.0, %v1571
        %1573 = vdwg.mxu0
        %v1574 = vlaneseq
        %v1575 = vshrl.u32 %v1574, 7
        %v1576 = vsub.s32 0, %v1575
        %v1577 = vrot.slane %v913, %v1576
        %v1578 = vlaneseq
        %v1579 = vshrl.u32 %v1578, 7
        %v1580 = vsub.s32 0, %v1579
        %v1581 = vrot.slane %v914, %v1580
        %v1582 = vmul.f32 %v1577, %v1556
        %v1583 = vmul.f32 %v1581, %v1558
        %v1584 = vmul.f32 %v1577, %v1560
        %v1585 = vmul.f32 %v1581, %v1562
        %v1586 = vmul.f32 %v1577, %v1566
        %v1587 = vmul.f32 %v1581, %v1568
        %v1588 = vmul.f32 %v1577, %v1570
        %v1589 = vmul.f32 %v1581, %v1572
        %vm1590 = vcmask 31744
        %v1592 = vsel %vm1590, %v1493, 0
        %v1595 = vsel %vm1590, %v1494, 0
        %v1598 = vsel %vm1590, %v1495, 0
        %v1601 = vsel %vm1590, %v1496, 0
        %v1604 = vsel %vm876, %v913, 0
        %v1607 = vsel %vm876, %v914, 0
        %1609 = vmatprep.subr.mxu0 %v1607
        %1610 = vmatpush1.msra.mxu0 %v1604
        %1611 = vmatprep.subr.mxu0 0.0
        %1612 = vmatpush1.msra.mxu0 0.0
        %1613 = vmatprep.subr.mxu0 0.0
        %1614 = vmatpush1.msra.mxu0 0.0
        %1615 = vmatprep.subr.mxu0 0.0
        %1616 = vmatpush1.msra.mxu0 0.0
        %1617 = vmatprep.subr.mxu0 0.0
        %1618 = vmatpush1.msra.mxu0 0.0
        %1619 = vmatprep.subr.mxu0 0.0
        %1620 = vmatpush1.msra.mxu0 0.0
        %1621 = vmatprep.subr.mxu0 0.0
        %1622 = vmatpush1.msra.mxu0 0.0
        %1623 = vmatprep.subr.mxu0 0.0
        %1624 = vmatpush1.msra.mxu0 0.0
        %1625 = vmatprep.subr.mxu0 0.0
        %1626 = vmatpush1.msra.mxu0 0.0
        %1627 = vmatprep.subr.mxu0 0.0
        %1628 = vmatpush1.msra.mxu0 0.0
        %1629 = vmatprep.subr.mxu0 0.0
        %1630 = vmatpush1.msra.mxu0 0.0
        %1631 = vmatprep.subr.mxu0 0.0
        %1632 = vmatpush1.msra.mxu0 0.0
        %1633 = vmatprep.subr.mxu0 0.0
        %1634 = vmatpush1.msra.mxu0 0.0
        %1635 = vmatprep.subr.mxu0 0.0
        %1636 = vmatpush1.msra.mxu0 0.0
        %1637 = vmatprep.subr.mxu0 0.0
        %1638 = vmatpush1.msra.mxu0 0.0
        %1639 = vmatprep.subr.mxu0 0.0
        %1640 = vmatpush1.msra.mxu0 0.0
        %1641 = vmatprep.subr.mxu0 0.0
        %1642 = vmatpush1.msra.mxu0 0.0
        %1643 = vmatprep.subr.mxu0 0.0
        %1644 = vmatpush1.msra.mxu0 0.0
        %1645 = vmatprep.subr.mxu0 0.0
        %1646 = vmatpush1.msra.mxu0 0.0
        %1647 = vmatprep.subr.mxu0 0.0
        %1648 = vmatpush1.msra.mxu0 0.0
        %1649 = vmatprep.subr.mxu0 0.0
        %1650 = vmatpush1.msra.mxu0 0.0
        %1651 = vmatprep.subr.mxu0 0.0
        %1652 = vmatpush1.msra.mxu0 0.0
        %1653 = vmatprep.subr.mxu0 0.0
        %1654 = vmatpush1.msra.mxu0 0.0
        %1655 = vmatprep.subr.mxu0 0.0
        %1656 = vmatpush1.msra.mxu0 0.0
        %1657 = vmatprep.subr.mxu0 0.0
        %1658 = vmatpush1.msra.mxu0 0.0
        %1659 = vmatprep.subr.mxu0 0.0
        %1660 = vmatpush1.msra.mxu0 0.0
        %1661 = vmatprep.subr.mxu0 0.0
        %1662 = vmatpush1.msra.mxu0 0.0
        %1663 = vmatprep.subr.mxu0 0.0
        %1664 = vmatpush1.msra.mxu0 0.0
        %1665 = vmatprep.subr.mxu0 0.0
        %1666 = vmatpush1.msra.mxu0 0.0
        %1667 = vmatprep.subr.mxu0 0.0
        %1668 = vmatpush1.msra.mxu0 0.0
        %1669 = vmatprep.subr.mxu0 0.0
        %1670 = vmatpush1.msra.mxu0 0.0
        %1671 = vmatprep.subr.mxu0 0.0
        %1672 = vmatpush1.msra.mxu0 0.0
        %1673 = vmatprep.mubr.f32.mxu0 0.0
        %1674 = vmatmul.mubr.f32.gmra.mrb[0].mxu0 %v1592
        %v1675 = vpop.f32.mrb[0].mxu0
        %v1676 = vadd.f32 %v1582, %v1675
        %v1677 = vpop.f32.mrb[0].mxu0
        %v1678 = vadd.f32 %v1583, %v1677
        %1679 = vmatprep.mubr.f32.mxu0 0.0
        %1680 = vmatmul.mubr.f32.gmra.mrb[0].mxu0 %v1595
        %v1681 = vpop.f32.mrb[0].mxu0
        %v1682 = vadd.f32 %v1584, %v1681
        %v1683 = vpop.f32.mrb[0].mxu0
        %v1684 = vadd.f32 %v1585, %v1683
        %1685 = vmatprep.mubr.f32.mxu0 0.0
        %1686 = vmatmul.mubr.f32.gmra.mrb[0].mxu0 %v1598
        %v1687 = vpop.f32.mrb[0].mxu0
        %v1688 = vadd.f32 %v1586, %v1687
        %v1689 = vpop.f32.mrb[0].mxu0
        %v1690 = vadd.f32 %v1587, %v1689
        %1691 = vmatprep.mubr.f32.mxu0 0.0
        %1692 = vmatmul.mubr.f32.gmra.mrb[0].mxu0 %v1601
        %v1693 = vpop.f32.mrb[0].mxu0
        %v1694 = vadd.f32 %v1588, %v1693
        %v1695 = vpop.f32.mrb[0].mxu0
        %v1696 = vadd.f32 %v1589, %v1695
        %1697 = vdwg.mxu0
        %v1698 = vld [vmem:[#allocation2 + $0x20] sm:$0xff]
        %v1699 = vld [vmem:[#allocation2 + $0x28] sm:$0xff]
        %v1700 = vld [vmem:[#allocation2 + $0x30] sm:$0xff]
        %v1701 = vld [vmem:[#allocation2 + $0x38] sm:$0xff]
        %v1706 = vunpack.c.l.b16 %v1698
        %v1707 = vunpack.c.h.b16 %v1698
        %v1708 = vunpack.c.l.b16 %v1699
        %v1709 = vunpack.c.h.b16 %v1699
        %v1710 = vunpack.c.l.b16 %v1700
        %v1711 = vunpack.c.h.b16 %v1700
        %v1712 = vunpack.c.l.b16 %v1701
        %v1713 = vunpack.c.h.b16 %v1701
        %v1714 = vpack.c.b16 %v1708, %v1706
        %v1715 = vpack.c.b16 %v1709, %v1707
        %v1716 = vpack.c.b16 %v1712, %v1710
        %v1717 = vpack.c.b16 %v1713, %v1711
        %1722 = vmatprep.subr.bf16.mxu0 %v1454
        %1723 = vmatpush1.bf16.msra.mxu0 %v1453
        %1724 = vmatprep.subr.bf16.mxu0 %v1456
        %1725 = vmatpush1.bf16.msra.mxu0 %v1455
        %1726 = vmatprep.subr.bf16.mxu0 %v1458
        %1727 = vmatpush1.bf16.msra.mxu0 %v1457
        %1728 = vmatprep.subr.bf16.mxu0 %v1460
        %1729 = vmatpush1.bf16.msra.mxu0 %v1459
        %1730 = vmatprep.subr.bf16.mxu0 %v1462
        %1731 = vmatpush1.bf16.msra.mxu0 %v1461
        %1732 = vmatprep.subr.bf16.mxu0 %v1464
        %1733 = vmatpush1.bf16.msra.mxu0 %v1463
        %1734 = vmatprep.subr.bf16.mxu0 %v1466
        %1735 = vmatpush1.bf16.msra.mxu0 %v1465
        %1736 = vmatprep.subr.bf16.mxu0 %v1468
        %1737 = vmatpush1.bf16.msra.mxu0 %v1467
        %1738 = vmatprep.subr.bf16.mxu0 %v1470
        %1739 = vmatpush1.bf16.msra.mxu0 %v1469
        %1740 = vmatprep.subr.bf16.mxu0 %v1472
        %1741 = vmatpush1.bf16.msra.mxu0 %v1471
        %1742 = vmatprep.subr.bf16.mxu0 %v1474
        %1743 = vmatpush1.bf16.msra.mxu0 %v1473
        %1744 = vmatprep.subr.bf16.mxu0 %v1476
        %1745 = vmatpush1.bf16.msra.mxu0 %v1475
        %1746 = vmatprep.subr.bf16.mxu0 %v1478
        %1747 = vmatpush1.bf16.msra.mxu0 %v1477
        %1748 = vmatprep.subr.bf16.mxu0 %v1480
        %1749 = vmatpush1.bf16.msra.mxu0 %v1479
        %1750 = vmatprep.subr.bf16.mxu0 %v1482
        %1751 = vmatpush1.bf16.msra.mxu0 %v1481
        %1752 = vmatprep.subr.bf16.mxu0 %v1484
        %1753 = vmatpush1.bf16.msra.mxu0 %v1483
        %1754 = vmatprep.mubr.bf16.mxu0 %v1715
        %1755 = vmatmul.mubr.bf16.gmra.mrb[0].mxu0 %v1714
        %v1756 = vpop.f32.mrb[0].mxu0
        %v1757 = vadd.f32 0.0, %v1756
        %v1758 = vpop.f32.mrb[0].mxu0
        %v1759 = vadd.f32 0.0, %v1758
        %v1760 = vpop.f32.mrb[0].mxu0
        %v1761 = vadd.f32 0.0, %v1760
        %v1762 = vpop.f32.mrb[0].mxu0
        %v1763 = vadd.f32 0.0, %v1762
        %1764 = vmatprep.mubr.bf16.mxu0 %v1717
        %1765 = vmatmul.mubr.bf16.gmra.mrb[0].mxu0 %v1716
        %v1766 = vpop.f32.mrb[0].mxu0
        %v1767 = vadd.f32 0.0, %v1766
        %v1768 = vpop.f32.mrb[0].mxu0
        %v1769 = vadd.f32 0.0, %v1768
        %v1770 = vpop.f32.mrb[0].mxu0
        %v1771 = vadd.f32 0.0, %v1770
        %v1772 = vpop.f32.mrb[0].mxu0
        %v1773 = vadd.f32 0.0, %v1772
        %1774 = vdwg.mxu0
        %v1775 = vlaneseq
        %v1776 = vshrl.u32 %v1775, 7
        %v1777 = vsub.s32 1, %v1776
        %v1778 = vrot.slane %v913, %v1777
        %v1779 = vlaneseq
        %v1780 = vshrl.u32 %v1779, 7
        %v1781 = vsub.s32 1, %v1780
        %v1782 = vrot.slane %v914, %v1781
        %v1783 = vmul.f32 %v1778, %v1757
        %v1784 = vmul.f32 %v1782, %v1759
        %v1785 = vmul.f32 %v1778, %v1761
        %v1786 = vmul.f32 %v1782, %v1763
        %v1787 = vmul.f32 %v1778, %v1767
        %v1788 = vmul.f32 %v1782, %v1769
        %v1789 = vmul.f32 %v1778, %v1771
        %v1790 = vmul.f32 %v1782, %v1773
        %v1791 = vadd.f32 %v1676, %v1783
        %v1792 = vadd.f32 %v1678, %v1784
        %v1793 = vadd.f32 %v1682, %v1785
        %v1794 = vadd.f32 %v1684, %v1786
        %v1795 = vadd.f32 %v1688, %v1787
        %v1796 = vadd.f32 %v1690, %v1788
        %v1797 = vadd.f32 %v1694, %v1789
        %v1798 = vadd.f32 %v1696, %v1790
        %v1799 = vld [vmem:[#allocation2 + $0x40] sm:$0xff]
        %v1800 = vld [vmem:[#allocation2 + $0x48] sm:$0xff]
        %v1801 = vld [vmem:[#allocation2 + $0x50] sm:$0xff]
        %v1802 = vld [vmem:[#allocation2 + $0x58] sm:$0xff]
        %v1807 = vunpack.c.l.b16 %v1799
        %v1808 = vunpack.c.h.b16 %v1799
        %v1809 = vunpack.c.l.b16 %v1800
        %v1810 = vunpack.c.h.b16 %v1800
        %v1811 = vunpack.c.l.b16 %v1801
        %v1812 = vunpack.c.h.b16 %v1801
        %v1813 = vunpack.c.l.b16 %v1802
        %v1814 = vunpack.c.h.b16 %v1802
        %v1815 = vpack.c.b16 %v1809, %v1807
        %v1816 = vpack.c.b16 %v1810, %v1808
        %v1817 = vpack.c.b16 %v1813, %v1811
        %v1818 = vpack.c.b16 %v1814, %v1812
        %1823 = vmatprep.subr.bf16.mxu0 %v1454
        %1824 = vmatpush1.bf16.msra.mxu0 %v1453
        %1825 = vmatprep.subr.bf16.mxu0 %v1456
        %1826 = vmatpush1.bf16.msra.mxu0 %v1455
        %1827 = vmatprep.subr.bf16.mxu0 %v1458
        %1828 = vmatpush1.bf16.msra.mxu0 %v1457
        %1829 = vmatprep.subr.bf16.mxu0 %v1460
        %1830 = vmatpush1.bf16.msra.mxu0 %v1459
        %1831 = vmatprep.subr.bf16.mxu0 %v1462
        %1832 = vmatpush1.bf16.msra.mxu0 %v1461
        %1833 = vmatprep.subr.bf16.mxu0 %v1464
        %1834 = vmatpush1.bf16.msra.mxu0 %v1463
        %1835 = vmatprep.subr.bf16.mxu0 %v1466
        %1836 = vmatpush1.bf16.msra.mxu0 %v1465
        %1837 = vmatprep.subr.bf16.mxu0 %v1468
        %1838 = vmatpush1.bf16.msra.mxu0 %v1467
        %1839 = vmatprep.subr.bf16.mxu0 %v1470
        %1840 = vmatpush1.bf16.msra.mxu0 %v1469
        %1841 = vmatprep.subr.bf16.mxu0 %v1472
        %1842 = vmatpush1.bf16.msra.mxu0 %v1471
        %1843 = vmatprep.subr.bf16.mxu0 %v1474
        %1844 = vmatpush1.bf16.msra.mxu0 %v1473
        %1845 = vmatprep.subr.bf16.mxu0 %v1476
        %1846 = vmatpush1.bf16.msra.mxu0 %v1475
        %1847 = vmatprep.subr.bf16.mxu0 %v1478
        %1848 = vmatpush1.bf16.msra.mxu0 %v1477
        %1849 = vmatprep.subr.bf16.mxu0 %v1480
        %1850 = vmatpush1.bf16.msra.mxu0 %v1479
        %1851 = vmatprep.subr.bf16.mxu0 %v1482
        %1852 = vmatpush1.bf16.msra.mxu0 %v1481
        %1853 = vmatprep.subr.bf16.mxu0 %v1484
        %1854 = vmatpush1.bf16.msra.mxu0 %v1483
        %1855 = vmatprep.mubr.bf16.mxu0 %v1816
        %1856 = vmatmul.mubr.bf16.gmra.mrb[0].mxu0 %v1815
        %v1857 = vpop.f32.mrb[0].mxu0
        %v1858 = vadd.f32 0.0, %v1857
        %v1859 = vpop.f32.mrb[0].mxu0
        %v1860 = vadd.f32 0.0, %v1859
        %v1861 = vpop.f32.mrb[0].mxu0
        %v1862 = vadd.f32 0.0, %v1861
        %v1863 = vpop.f32.mrb[0].mxu0
        %v1864 = vadd.f32 0.0, %v1863
        %1865 = vmatprep.mubr.bf16.mxu0 %v1818
        %1866 = vmatmul.mubr.bf16.gmra.mrb[0].mxu0 %v1817
        %v1867 = vpop.f32.mrb[0].mxu0
        %v1868 = vadd.f32 0.0, %v1867
        %v1869 = vpop.f32.mrb[0].mxu0
        %v1870 = vadd.f32 0.0, %v1869
        %v1871 = vpop.f32.mrb[0].mxu0
        %v1872 = vadd.f32 0.0, %v1871
        %v1873 = vpop.f32.mrb[0].mxu0
        %v1874 = vadd.f32 0.0, %v1873
        %1875 = vdwg.mxu0
        %v1876 = vlaneseq
        %v1877 = vshrl.u32 %v1876, 7
        %v1878 = vsub.s32 2, %v1877
        %v1879 = vrot.slane %v913, %v1878
        %v1880 = vlaneseq
        %v1881 = vshrl.u32 %v1880, 7
        %v1882 = vsub.s32 2, %v1881
        %v1883 = vrot.slane %v914, %v1882
        %v1884 = vmul.f32 %v1879, %v1858
        %v1885 = vmul.f32 %v1883, %v1860
        %v1886 = vmul.f32 %v1879, %v1862
        %v1887 = vmul.f32 %v1883, %v1864
        %v1888 = vmul.f32 %v1879, %v1868
        %v1889 = vmul.f32 %v1883, %v1870
        %v1890 = vmul.f32 %v1879, %v1872
        %v1891 = vmul.f32 %v1883, %v1874
        %v1892 = vadd.f32 %v1791, %v1884
        %v1893 = vadd.f32 %v1792, %v1885
        %v1894 = vadd.f32 %v1793, %v1886
        %v1895 = vadd.f32 %v1794, %v1887
        %v1896 = vadd.f32 %v1795, %v1888
        %v1897 = vadd.f32 %v1796, %v1889
        %v1898 = vadd.f32 %v1797, %v1890
        %v1899 = vadd.f32 %v1798, %v1891
        %v1900 = vld [vmem:[#allocation2 + $0x60] sm:$0xff]
        %v1901 = vld [vmem:[#allocation2 + $0x68] sm:$0xff]
        %v1902 = vld [vmem:[#allocation2 + $0x70] sm:$0xff]
        %v1903 = vld [vmem:[#allocation2 + $0x78] sm:$0xff]
        %v1908 = vunpack.c.l.b16 %v1900
        %v1909 = vunpack.c.h.b16 %v1900
        %v1910 = vunpack.c.l.b16 %v1901
        %v1911 = vunpack.c.h.b16 %v1901
        %v1912 = vunpack.c.l.b16 %v1902
        %v1913 = vunpack.c.h.b16 %v1902
        %v1914 = vunpack.c.l.b16 %v1903
        %v1915 = vunpack.c.h.b16 %v1903
        %v1916 = vpack.c.b16 %v1910, %v1908
        %v1917 = vpack.c.b16 %v1911, %v1909
        %v1918 = vpack.c.b16 %v1914, %v1912
        %v1919 = vpack.c.b16 %v1915, %v1913
        %1924 = vmatprep.subr.bf16.mxu0 %v1454
        %1925 = vmatpush1.bf16.msra.mxu0 %v1453
        %1926 = vmatprep.subr.bf16.mxu0 %v1456
        %1927 = vmatpush1.bf16.msra.mxu0 %v1455
        %1928 = vmatprep.subr.bf16.mxu0 %v1458
        %1929 = vmatpush1.bf16.msra.mxu0 %v1457
        %1930 = vmatprep.subr.bf16.mxu0 %v1460
        %1931 = vmatpush1.bf16.msra.mxu0 %v1459
        %1932 = vmatprep.subr.bf16.mxu0 %v1462
        %1933 = vmatpush1.bf16.msra.mxu0 %v1461
        %1934 = vmatprep.subr.bf16.mxu0 %v1464
        %1935 = vmatpush1.bf16.msra.mxu0 %v1463
        %1936 = vmatprep.subr.bf16.mxu0 %v1466
        %1937 = vmatpush1.bf16.msra.mxu0 %v1465
        %1938 = vmatprep.subr.bf16.mxu0 %v1468
        %1939 = vmatpush1.bf16.msra.mxu0 %v1467
        %1940 = vmatprep.subr.bf16.mxu0 %v1470
        %1941 = vmatpush1.bf16.msra.mxu0 %v1469
        %1942 = vmatprep.subr.bf16.mxu0 %v1472
        %1943 = vmatpush1.bf16.msra.mxu0 %v1471
        %1944 = vmatprep.subr.bf16.mxu0 %v1474
        %1945 = vmatpush1.bf16.msra.mxu0 %v1473
        %1946 = vmatprep.subr.bf16.mxu0 %v1476
        %1947 = vmatpush1.bf16.msra.mxu0 %v1475
        %1948 = vmatprep.subr.bf16.mxu0 %v1478
        %1949 = vmatpush1.bf16.msra.mxu0 %v1477
        %1950 = vmatprep.subr.bf16.mxu0 %v1480
        %1951 = vmatpush1.bf16.msra.mxu0 %v1479
        %1952 = vmatprep.subr.bf16.mxu0 %v1482
        %1953 = vmatpush1.bf16.msra.mxu0 %v1481
        %1954 = vmatprep.subr.bf16.mxu0 %v1484
        %1955 = vmatpush1.bf16.msra.mxu0 %v1483
        %1956 = vmatprep.mubr.bf16.mxu0 %v1917
        %1957 = vmatmul.mubr.bf16.gmra.mrb[0].mxu0 %v1916
        %v1958 = vpop.f32.mrb[0].mxu0
        %v1959 = vadd.f32 0.0, %v1958
        %v1960 = vpop.f32.mrb[0].mxu0
        %v1961 = vadd.f32 0.0, %v1960
        %v1962 = vpop.f32.mrb[0].mxu0
        %v1963 = vadd.f32 0.0, %v1962
        %v1964 = vpop.f32.mrb[0].mxu0
        %v1965 = vadd.f32 0.0, %v1964
        %1966 = vmatprep.mubr.bf16.mxu0 %v1919
        %1967 = vmatmul.mubr.bf16.gmra.mrb[0].mxu0 %v1918
        %v1968 = vpop.f32.mrb[0].mxu0
        %v1969 = vadd.f32 0.0, %v1968
        %v1970 = vpop.f32.mrb[0].mxu0
        %v1971 = vadd.f32 0.0, %v1970
        %v1972 = vpop.f32.mrb[0].mxu0
        %v1973 = vadd.f32 0.0, %v1972
        %v1974 = vpop.f32.mrb[0].mxu0
        %v1975 = vadd.f32 0.0, %v1974
        %1976 = vdwg.mxu0
        %v1977 = vlaneseq
        %v1978 = vshrl.u32 %v1977, 7
        %v1979 = vsub.s32 3, %v1978
        %v1980 = vrot.slane %v913, %v1979
        %v1981 = vlaneseq
        %v1982 = vshrl.u32 %v1981, 7
        %v1983 = vsub.s32 3, %v1982
        %v1984 = vrot.slane %v914, %v1983
        %v1985 = vmul.f32 %v1980, %v1959
        %v1986 = vmul.f32 %v1984, %v1961
        %v1987 = vmul.f32 %v1980, %v1963
        %v1988 = vmul.f32 %v1984, %v1965
        %v1989 = vmul.f32 %v1980, %v1969
        %v1990 = vmul.f32 %v1984, %v1971
        %v1991 = vmul.f32 %v1980, %v1973
        %v1992 = vmul.f32 %v1984, %v1975
        %v1993 = vadd.f32 %v1892, %v1985
        %v1994 = vadd.f32 %v1893, %v1986
        %v1995 = vadd.f32 %v1894, %v1987
        %v1996 = vadd.f32 %v1895, %v1988
        %v1997 = vadd.f32 %v1896, %v1989
        %v1998 = vadd.f32 %v1897, %v1990
        %v1999 = vadd.f32 %v1898, %v1991
        %v2000 = vadd.f32 %v1899, %v1992
        %v2001 = vmul.f32 %v1993, %v1485
        %v2002 = vmul.f32 %v1994, %v1486
        %v2003 = vmul.f32 %v1995, %v1487
        %v2004 = vmul.f32 %v1996, %v1488
        %v2005 = vmul.f32 %v1997, %v1489
        %v2006 = vmul.f32 %v1998, %v1490
        %v2007 = vmul.f32 %v1999, %v1491
        %v2008 = vmul.f32 %v2000, %v1492
        %v2009 = vadd.f32 %v2001, %v2003
        %v2010 = vadd.f32 %v2009, %v2005
        %v2011 = vadd.f32 %v2010, %v2007
        %v2012 = vrot.slane %v2011, 4
        %v2013 = vadd.f32 %v2011, %v2012
        %v2014 = vrot.slane %v2013, 2
        %v2015 = vadd.f32 %v2013, %v2014
        %v2016 = vrot.slane %v2015, 1
        %v2017 = vadd.f32 %v2015, %v2016
        %v2018 = vadd.f32 %v2002, %v2004
        %v2019 = vadd.f32 %v2018, %v2006
        %v2020 = vadd.f32 %v2019, %v2008
        %v2021 = vrot.slane %v2020, 4
        %v2022 = vadd.f32 %v2020, %v2021
        %v2023 = vrot.slane %v2022, 2
        %v2024 = vadd.f32 %v2022, %v2023
        %v2025 = vrot.slane %v2024, 1
        %v2026 = vadd.f32 %v2024, %v2025
        %s2027 = scalar_lea.vmem %s8, 32
        %v2028 = vld [vmem:[%s2027] sm:$0xff]
        %v2029 = vld [vmem:[%s2027 + $0x8] sm:$0xff]
        %v2030 = vld [vmem:[%s2027 + $0x10] sm:$0xff]
        %v2031 = vld [vmem:[%s2027 + $0x18] sm:$0xff]
        %v2032 = vld [vmem:[#allocation2 + $0x80] sm:$0xff]
        %v2033 = vld [vmem:[#allocation2 + $0x88] sm:$0xff]
        %v2034 = vld [vmem:[#allocation2 + $0x90] sm:$0xff]
        %v2035 = vld [vmem:[#allocation2 + $0x98] sm:$0xff]
        %v2040 = vunpack.c.l.b16 %v2032
        %v2041 = vunpack.c.h.b16 %v2032
        %v2042 = vunpack.c.l.b16 %v2033
        %v2043 = vunpack.c.h.b16 %v2033
        %v2044 = vunpack.c.l.b16 %v2034
        %v2045 = vunpack.c.h.b16 %v2034
        %v2046 = vunpack.c.l.b16 %v2035
        %v2047 = vunpack.c.h.b16 %v2035
        %v2048 = vpack.c.b16 %v2042, %v2040
        %v2049 = vpack.c.b16 %v2043, %v2041
        %v2050 = vpack.c.b16 %v2046, %v2044
        %v2051 = vpack.c.b16 %v2047, %v2045
        %2056 = vmatprep.subr.bf16.mxu0 %v1454
        %2057 = vmatpush1.bf16.msra.mxu0 %v1453
        %2058 = vmatprep.subr.bf16.mxu0 %v1456
        %2059 = vmatpush1.bf16.msra.mxu0 %v1455
        %2060 = vmatprep.subr.bf16.mxu0 %v1458
        %2061 = vmatpush1.bf16.msra.mxu0 %v1457
        %2062 = vmatprep.subr.bf16.mxu0 %v1460
        %2063 = vmatpush1.bf16.msra.mxu0 %v1459
        %2064 = vmatprep.subr.bf16.mxu0 %v1462
        %2065 = vmatpush1.bf16.msra.mxu0 %v1461
        %2066 = vmatprep.subr.bf16.mxu0 %v1464
        %2067 = vmatpush1.bf16.msra.mxu0 %v1463
        %2068 = vmatprep.subr.bf16.mxu0 %v1466
        %2069 = vmatpush1.bf16.msra.mxu0 %v1465
        %2070 = vmatprep.subr.bf16.mxu0 %v1468
        %2071 = vmatpush1.bf16.msra.mxu0 %v1467
        %2072 = vmatprep.subr.bf16.mxu0 %v1470
        %2073 = vmatpush1.bf16.msra.mxu0 %v1469
        %2074 = vmatprep.subr.bf16.mxu0 %v1472
        %2075 = vmatpush1.bf16.msra.mxu0 %v1471
        %2076 = vmatprep.subr.bf16.mxu0 %v1474
        %2077 = vmatpush1.bf16.msra.mxu0 %v1473
        %2078 = vmatprep.subr.bf16.mxu0 %v1476
        %2079 = vmatpush1.bf16.msra.mxu0 %v1475
        %2080 = vmatprep.subr.bf16.mxu0 %v1478
        %2081 = vmatpush1.bf16.msra.mxu0 %v1477
        %2082 = vmatprep.subr.bf16.mxu0 %v1480
        %2083 = vmatpush1.bf16.msra.mxu0 %v1479
        %2084 = vmatprep.subr.bf16.mxu0 %v1482
        %2085 = vmatpush1.bf16.msra.mxu0 %v1481
        %2086 = vmatprep.subr.bf16.mxu0 %v1484
        %2087 = vmatpush1.bf16.msra.mxu0 %v1483
        %2088 = vmatprep.mubr.bf16.mxu0 %v2049
        %2089 = vmatmul.mubr.bf16.gmra.mrb[0].mxu0 %v2048
        %v2090 = vpop.f32.mrb[0].mxu0
        %v2091 = vadd.f32 0.0, %v2090
        %v2092 = vpop.f32.mrb[0].mxu0
        %v2093 = vadd.f32 0.0, %v2092
        %v2094 = vpop.f32.mrb[0].mxu0
        %v2095 = vadd.f32 0.0, %v2094
        %v2096 = vpop.f32.mrb[0].mxu0
        %v2097 = vadd.f32 0.0, %v2096
        %2098 = vmatprep.mubr.bf16.mxu0 %v2051
        %2099 = vmatmul.mubr.bf16.gmra.mrb[0].mxu0 %v2050
        %v2100 = vpop.f32.mrb[0].mxu0
        %v2101 = vadd.f32 0.0, %v2100
        %v2102 = vpop.f32.mrb[0].mxu0
        %v2103 = vadd.f32 0.0, %v2102
        %v2104 = vpop.f32.mrb[0].mxu0
        %v2105 = vadd.f32 0.0, %v2104
        %v2106 = vpop.f32.mrb[0].mxu0
        %v2107 = vadd.f32 0.0, %v2106
        %2108 = vdwg.mxu0
        %v2109 = vmul.f32 %v1577, %v2091
        %v2110 = vmul.f32 %v1581, %v2093
        %v2111 = vmul.f32 %v1577, %v2095
        %v2112 = vmul.f32 %v1581, %v2097
        %v2113 = vmul.f32 %v1577, %v2101
        %v2114 = vmul.f32 %v1581, %v2103
        %v2115 = vmul.f32 %v1577, %v2105
        %v2116 = vmul.f32 %v1581, %v2107
        %v2118 = vsel %vm1590, %v2028, 0
        %v2121 = vsel %vm1590, %v2029, 0
        %v2124 = vsel %vm1590, %v2030, 0
        %v2127 = vsel %vm1590, %v2031, 0
        %2129 = vmatprep.subr.mxu0 %v1607
        %2130 = vmatpush1.msra.mxu0 %v1604
        %2131 = vmatprep.subr.mxu0 0.0
        %2132 = vmatpush1.msra.mxu0 0.0
        %2133 = vmatprep.subr.mxu0 0.0
        %2134 = vmatpush1.msra.mxu0 0.0
        %2135 = vmatprep.subr.mxu0 0.0
        %2136 = vmatpush1.msra.mxu0 0.0
        %2137 = vmatprep.subr.mxu0 0.0
        %2138 = vmatpush1.msra.mxu0 0.0
        %2139 = vmatprep.subr.mxu0 0.0
        %2140 = vmatpush1.msra.mxu0 0.0
        %2141 = vmatprep.subr.mxu0 0.0
        %2142 = vmatpush1.msra.mxu0 0.0
        %2143 = vmatprep.subr.mxu0 0.0
        %2144 = vmatpush1.msra.mxu0 0.0
        %2145 = vmatprep.subr.mxu0 0.0
        %2146 = vmatpush1.msra.mxu0 0.0
        %2147 = vmatprep.subr.mxu0 0.0
        %2148 = vmatpush1.msra.mxu0 0.0
        %2149 = vmatprep.subr.mxu0 0.0
        %2150 = vmatpush1.msra.mxu0 0.0
        %2151 = vmatprep.subr.mxu0 0.0
        %2152 = vmatpush1.msra.mxu0 0.0
        %2153 = vmatprep.subr.mxu0 0.0
        %2154 = vmatpush1.msra.mxu0 0.0
        %2155 = vmatprep.subr.mxu0 0.0
        %2156 = vmatpush1.msra.mxu0 0.0
        %2157 = vmatprep.subr.mxu0 0.0
        %2158 = vmatpush1.msra.mxu0 0.0
        %2159 = vmatprep.subr.mxu0 0.0
        %2160 = vmatpush1.msra.mxu0 0.0
        %2161 = vmatprep.subr.mxu0 0.0
        %2162 = vmatpush1.msra.mxu0 0.0
        %2163 = vmatprep.subr.mxu0 0.0
        %2164 = vmatpush1.msra.mxu0 0.0
        %2165 = vmatprep.subr.mxu0 0.0
        %2166 = vmatpush1.msra.mxu0 0.0
        %2167 = vmatprep.subr.mxu0 0.0
        %2168 = vmatpush1.msra.mxu0 0.0
        %2169 = vmatprep.subr.mxu0 0.0
        %2170 = vmatpush1.msra.mxu0 0.0
        %2171 = vmatprep.subr.mxu0 0.0
        %2172 = vmatpush1.msra.mxu0 0.0
        %2173 = vmatprep.subr.mxu0 0.0
        %2174 = vmatpush1.msra.mxu0 0.0
        %2175 = vmatprep.subr.mxu0 0.0
        %2176 = vmatpush1.msra.mxu0 0.0
        %2177 = vmatprep.subr.mxu0 0.0
        %2178 = vmatpush1.msra.mxu0 0.0
        %2179 = vmatprep.subr.mxu0 0.0
        %2180 = vmatpush1.msra.mxu0 0.0
        %2181 = vmatprep.subr.mxu0 0.0
        %2182 = vmatpush1.msra.mxu0 0.0
        %2183 = vmatprep.subr.mxu0 0.0
        %2184 = vmatpush1.msra.mxu0 0.0
        %2185 = vmatprep.subr.mxu0 0.0
        %2186 = vmatpush1.msra.mxu0 0.0
        %2187 = vmatprep.subr.mxu0 0.0
        %2188 = vmatpush1.msra.mxu0 0.0
        %2189 = vmatprep.subr.mxu0 0.0
        %2190 = vmatpush1.msra.mxu0 0.0
        %2191 = vmatprep.subr.mxu0 0.0
        %2192 = vmatpush1.msra.mxu0 0.0
        %2193 = vmatprep.mubr.f32.mxu0 0.0
        %2194 = vmatmul.mubr.f32.gmra.mrb[0].mxu0 %v2118
        %v2195 = vpop.f32.mrb[0].mxu0
        %v2196 = vadd.f32 %v2109, %v2195
        %v2197 = vpop.f32.mrb[0].mxu0
        %v2198 = vadd.f32 %v2110, %v2197
        %2199 = vmatprep.mubr.f32.mxu0 0.0
        %2200 = vmatmul.mubr.f32.gmra.mrb[0].mxu0 %v2121
        %v2201 = vpop.f32.mrb[0].mxu0
        %v2202 = vadd.f32 %v2111, %v2201
        %v2203 = vpop.f32.mrb[0].mxu0
        %v2204 = vadd.f32 %v2112, %v2203
        %2205 = vmatprep.mubr.f32.mxu0 0.0
        %2206 = vmatmul.mubr.f32.gmra.mrb[0].mxu0 %v2124
        %v2207 = vpop.f32.mrb[0].mxu0
        %v2208 = vadd.f32 %v2113, %v2207
        %v2209 = vpop.f32.mrb[0].mxu0
        %v2210 = vadd.f32 %v2114, %v2209
        %2211 = vmatprep.mubr.f32.mxu0 0.0
        %2212 = vmatmul.mubr.f32.gmra.mrb[0].mxu0 %v2127
        %v2213 = vpop.f32.mrb[0].mxu0
        %v2214 = vadd.f32 %v2115, %v2213
        %v2215 = vpop.f32.mrb[0].mxu0
        %v2216 = vadd.f32 %v2116, %v2215
        %2217 = vdwg.mxu0
        %v2218 = vld [vmem:[#allocation2 + $0xa0] sm:$0xff]
        %v2219 = vld [vmem:[#allocation2 + $0xa8] sm:$0xff]
        %v2220 = vld [vmem:[#allocation2 + $0xb0] sm:$0xff]
        %v2221 = vld [vmem:[#allocation2 + $0xb8] sm:$0xff]
        %v2226 = vunpack.c.l.b16 %v2218
        %v2227 = vunpack.c.h.b16 %v2218
        %v2228 = vunpack.c.l.b16 %v2219
        %v2229 = vunpack.c.h.b16 %v2219
        %v2230 = vunpack.c.l.b16 %v2220
        %v2231 = vunpack.c.h.b16 %v2220
        %v2232 = vunpack.c.l.b16 %v2221
        %v2233 = vunpack.c.h.b16 %v2221
        %v2234 = vpack.c.b16 %v2228, %v2226
        %v2235 = vpack.c.b16 %v2229, %v2227
        %v2236 = vpack.c.b16 %v2232, %v2230
        %v2237 = vpack.c.b16 %v2233, %v2231
        %2242 = vmatprep.subr.bf16.mxu0 %v1454
        %2243 = vmatpush1.bf16.msra.mxu0 %v1453
        %2244 = vmatprep.subr.bf16.mxu0 %v1456
        %2245 = vmatpush1.bf16.msra.mxu0 %v1455
        %2246 = vmatprep.subr.bf16.mxu0 %v1458
        %2247 = vmatpush1.bf16.msra.mxu0 %v1457
        %2248 = vmatprep.subr.bf16.mxu0 %v1460
        %2249 = vmatpush1.bf16.msra.mxu0 %v1459
        %2250 = vmatprep.subr.bf16.mxu0 %v1462
        %2251 = vmatpush1.bf16.msra.mxu0 %v1461
        %2252 = vmatprep.subr.bf16.mxu0 %v1464
        %2253 = vmatpush1.bf16.msra.mxu0 %v1463
        %2254 = vmatprep.subr.bf16.mxu0 %v1466
        %2255 = vmatpush1.bf16.msra.mxu0 %v1465
        %2256 = vmatprep.subr.bf16.mxu0 %v1468
        %2257 = vmatpush1.bf16.msra.mxu0 %v1467
        %2258 = vmatprep.subr.bf16.mxu0 %v1470
        %2259 = vmatpush1.bf16.msra.mxu0 %v1469
        %2260 = vmatprep.subr.bf16.mxu0 %v1472
        %2261 = vmatpush1.bf16.msra.mxu0 %v1471
        %2262 = vmatprep.subr.bf16.mxu0 %v1474
        %2263 = vmatpush1.bf16.msra.mxu0 %v1473
        %2264 = vmatprep.subr.bf16.mxu0 %v1476
        %2265 = vmatpush1.bf16.msra.mxu0 %v1475
        %2266 = vmatprep.subr.bf16.mxu0 %v1478
        %2267 = vmatpush1.bf16.msra.mxu0 %v1477
        %2268 = vmatprep.subr.bf16.mxu0 %v1480
        %2269 = vmatpush1.bf16.msra.mxu0 %v1479
        %2270 = vmatprep.subr.bf16.mxu0 %v1482
        %2271 = vmatpush1.bf16.msra.mxu0 %v1481
        %2272 = vmatprep.subr.bf16.mxu0 %v1484
        %2273 = vmatpush1.bf16.msra.mxu0 %v1483
        %2274 = vmatprep.mubr.bf16.mxu0 %v2235
        %2275 = vmatmul.mubr.bf16.gmra.mrb[0].mxu0 %v2234
        %v2276 = vpop.f32.mrb[0].mxu0
        %v2277 = vadd.f32 0.0, %v2276
        %v2278 = vpop.f32.mrb[0].mxu0
        %v2279 = vadd.f32 0.0, %v2278
        %v2280 = vpop.f32.mrb[0].mxu0
        %v2281 = vadd.f32 0.0, %v2280
        %v2282 = vpop.f32.mrb[0].mxu0
        %v2283 = vadd.f32 0.0, %v2282
        %2284 = vmatprep.mubr.bf16.mxu0 %v2237
        %2285 = vmatmul.mubr.bf16.gmra.mrb[0].mxu0 %v2236
        %v2286 = vpop.f32.mrb[0].mxu0
        %v2287 = vadd.f32 0.0, %v2286
        %v2288 = vpop.f32.mrb[0].mxu0
        %v2289 = vadd.f32 0.0, %v2288
        %v2290 = vpop.f32.mrb[0].mxu0
        %v2291 = vadd.f32 0.0, %v2290
        %v2292 = vpop.f32.mrb[0].mxu0
        %v2293 = vadd.f32 0.0, %v2292
        %2294 = vdwg.mxu0
        %v2295 = vmul.f32 %v1778, %v2277
        %v2296 = vmul.f32 %v1782, %v2279
        %v2297 = vmul.f32 %v1778, %v2281
        %v2298 = vmul.f32 %v1782, %v2283
        %v2299 = vmul.f32 %v1778, %v2287
        %v2300 = vmul.f32 %v1782, %v2289
        %v2301 = vmul.f32 %v1778, %v2291
        %v2302 = vmul.f32 %v1782, %v2293
        %v2303 = vadd.f32 %v2196, %v2295
        %v2304 = vadd.f32 %v2198, %v2296
        %v2305 = vadd.f32 %v2202, %v2297
        %v2306 = vadd.f32 %v2204, %v2298
        %v2307 = vadd.f32 %v2208, %v2299
        %v2308 = vadd.f32 %v2210, %v2300
        %v2309 = vadd.f32 %v2214, %v2301
        %v2310 = vadd.f32 %v2216, %v2302
        %v2311 = vld [vmem:[#allocation2 + $0xc0] sm:$0xff]
        %v2312 = vld [vmem:[#allocation2 + $0xc8] sm:$0xff]
        %v2313 = vld [vmem:[#allocation2 + $0xd0] sm:$0xff]
        %v2314 = vld [vmem:[#allocation2 + $0xd8] sm:$0xff]
        %v2319 = vunpack.c.l.b16 %v2311
        %v2320 = vunpack.c.h.b16 %v2311
        %v2321 = vunpack.c.l.b16 %v2312
        %v2322 = vunpack.c.h.b16 %v2312
        %v2323 = vunpack.c.l.b16 %v2313
        %v2324 = vunpack.c.h.b16 %v2313
        %v2325 = vunpack.c.l.b16 %v2314
        %v2326 = vunpack.c.h.b16 %v2314
        %v2327 = vpack.c.b16 %v2321, %v2319
        %v2328 = vpack.c.b16 %v2322, %v2320
        %v2329 = vpack.c.b16 %v2325, %v2323
        %v2330 = vpack.c.b16 %v2326, %v2324
        %2335 = vmatprep.subr.bf16.mxu0 %v1454
        %2336 = vmatpush1.bf16.msra.mxu0 %v1453
        %2337 = vmatprep.subr.bf16.mxu0 %v1456
        %2338 = vmatpush1.bf16.msra.mxu0 %v1455
        %2339 = vmatprep.subr.bf16.mxu0 %v1458
        %2340 = vmatpush1.bf16.msra.mxu0 %v1457
        %2341 = vmatprep.subr.bf16.mxu0 %v1460
        %2342 = vmatpush1.bf16.msra.mxu0 %v1459
        %2343 = vmatprep.subr.bf16.mxu0 %v1462
        %2344 = vmatpush1.bf16.msra.mxu0 %v1461
        %2345 = vmatprep.subr.bf16.mxu0 %v1464
        %2346 = vmatpush1.bf16.msra.mxu0 %v1463
        %2347 = vmatprep.subr.bf16.mxu0 %v1466
        %2348 = vmatpush1.bf16.msra.mxu0 %v1465
        %2349 = vmatprep.subr.bf16.mxu0 %v1468
        %2350 = vmatpush1.bf16.msra.mxu0 %v1467
        %2351 = vmatprep.subr.bf16.mxu0 %v1470
        %2352 = vmatpush1.bf16.msra.mxu0 %v1469
        %2353 = vmatprep.subr.bf16.mxu0 %v1472
        %2354 = vmatpush1.bf16.msra.mxu0 %v1471
        %2355 = vmatprep.subr.bf16.mxu0 %v1474
        %2356 = vmatpush1.bf16.msra.mxu0 %v1473
        %2357 = vmatprep.subr.bf16.mxu0 %v1476
        %2358 = vmatpush1.bf16.msra.mxu0 %v1475
        %2359 = vmatprep.subr.bf16.mxu0 %v1478
        %2360 = vmatpush1.bf16.msra.mxu0 %v1477
        %2361 = vmatprep.subr.bf16.mxu0 %v1480
        %2362 = vmatpush1.bf16.msra.mxu0 %v1479
        %2363 = vmatprep.subr.bf16.mxu0 %v1482
        %2364 = vmatpush1.bf16.msra.mxu0 %v1481
        %2365 = vmatprep.subr.bf16.mxu0 %v1484
        %2366 = vmatpush1.bf16.msra.mxu0 %v1483
        %2367 = vmatprep.mubr.bf16.mxu0 %v2328
        %2368 = vmatmul.mubr.bf16.gmra.mrb[0].mxu0 %v2327
        %v2369 = vpop.f32.mrb[0].mxu0
        %v2370 = vadd.f32 0.0, %v2369
        %v2371 = vpop.f32.mrb[0].mxu0
        %v2372 = vadd.f32 0.0, %v2371
        %v2373 = vpop.f32.mrb[0].mxu0
        %v2374 = vadd.f32 0.0, %v2373
        %v2375 = vpop.f32.mrb[0].mxu0
        %v2376 = vadd.f32 0.0, %v2375
        %2377 = vmatprep.mubr.bf16.mxu0 %v2330
        %2378 = vmatmul.mubr.bf16.gmra.mrb[0].mxu0 %v2329
        %v2379 = vpop.f32.mrb[0].mxu0
        %v2380 = vadd.f32 0.0, %v2379
        %v2381 = vpop.f32.mrb[0].mxu0
        %v2382 = vadd.f32 0.0, %v2381
        %v2383 = vpop.f32.mrb[0].mxu0
        %v2384 = vadd.f32 0.0, %v2383
        %v2385 = vpop.f32.mrb[0].mxu0
        %v2386 = vadd.f32 0.0, %v2385
        %2387 = vdwg.mxu0
        %v2388 = vmul.f32 %v1879, %v2370
        %v2389 = vmul.f32 %v1883, %v2372
        %v2390 = vmul.f32 %v1879, %v2374
        %v2391 = vmul.f32 %v1883, %v2376
        %v2392 = vmul.f32 %v1879, %v2380
        %v2393 = vmul.f32 %v1883, %v2382
        %v2394 = vmul.f32 %v1879, %v2384
        %v2395 = vmul.f32 %v1883, %v2386
        %v2396 = vadd.f32 %v2303, %v2388
        %v2397 = vadd.f32 %v2304, %v2389
        %v2398 = vadd.f32 %v2305, %v2390
        %v2399 = vadd.f32 %v2306, %v2391
        %v2400 = vadd.f32 %v2307, %v2392
        %v2401 = vadd.f32 %v2308, %v2393
        %v2402 = vadd.f32 %v2309, %v2394
        %v2403 = vadd.f32 %v2310, %v2395
        %v2404 = vld [vmem:[#allocation2 + $0xe0] sm:$0xff]
        %v2405 = vld [vmem:[#allocation2 + $0xe8] sm:$0xff]
        %v2406 = vld [vmem:[#allocation2 + $0xf0] sm:$0xff]
        %v2407 = vld [vmem:[#allocation2 + $0xf8] sm:$0xff]
        %v2412 = vunpack.c.l.b16 %v2404
        %v2413 = vunpack.c.h.b16 %v2404
        %v2414 = vunpack.c.l.b16 %v2405
        %v2415 = vunpack.c.h.b16 %v2405
        %v2416 = vunpack.c.l.b16 %v2406
        %v2417 = vunpack.c.h.b16 %v2406
        %v2418 = vunpack.c.l.b16 %v2407
        %v2419 = vunpack.c.h.b16 %v2407
        %v2420 = vpack.c.b16 %v2414, %v2412
        %v2421 = vpack.c.b16 %v2415, %v2413
        %v2422 = vpack.c.b16 %v2418, %v2416
        %v2423 = vpack.c.b16 %v2419, %v2417
        %2428 = vmatprep.subr.bf16.mxu0 %v1454
        %2429 = vmatpush1.bf16.msra.mxu0 %v1453
        %2430 = vmatprep.subr.bf16.mxu0 %v1456
        %2431 = vmatpush1.bf16.msra.mxu0 %v1455
        %2432 = vmatprep.subr.bf16.mxu0 %v1458
        %2433 = vmatpush1.bf16.msra.mxu0 %v1457
        %2434 = vmatprep.subr.bf16.mxu0 %v1460
        %2435 = vmatpush1.bf16.msra.mxu0 %v1459
        %2436 = vmatprep.subr.bf16.mxu0 %v1462
        %2437 = vmatpush1.bf16.msra.mxu0 %v1461
        %2438 = vmatprep.subr.bf16.mxu0 %v1464
        %2439 = vmatpush1.bf16.msra.mxu0 %v1463
        %2440 = vmatprep.subr.bf16.mxu0 %v1466
        %2441 = vmatpush1.bf16.msra.mxu0 %v1465
        %2442 = vmatprep.subr.bf16.mxu0 %v1468
        %2443 = vmatpush1.bf16.msra.mxu0 %v1467
        %2444 = vmatprep.subr.bf16.mxu0 %v1470
        %2445 = vmatpush1.bf16.msra.mxu0 %v1469
        %2446 = vmatprep.subr.bf16.mxu0 %v1472
        %2447 = vmatpush1.bf16.msra.mxu0 %v1471
        %2448 = vmatprep.subr.bf16.mxu0 %v1474
        %2449 = vmatpush1.bf16.msra.mxu0 %v1473
        %2450 = vmatprep.subr.bf16.mxu0 %v1476
        %2451 = vmatpush1.bf16.msra.mxu0 %v1475
        %2452 = vmatprep.subr.bf16.mxu0 %v1478
        %2453 = vmatpush1.bf16.msra.mxu0 %v1477
        %2454 = vmatprep.subr.bf16.mxu0 %v1480
        %2455 = vmatpush1.bf16.msra.mxu0 %v1479
        %2456 = vmatprep.subr.bf16.mxu0 %v1482
        %2457 = vmatpush1.bf16.msra.mxu0 %v1481
        %2458 = vmatprep.subr.bf16.mxu0 %v1484
        %2459 = vmatpush1.bf16.msra.mxu0 %v1483
        %2460 = vmatprep.mubr.bf16.mxu0 %v2421
        %2461 = vmatmul.mubr.bf16.gmra.mrb[0].mxu0 %v2420
        %v2462 = vpop.f32.mrb[0].mxu0
        %v2463 = vadd.f32 0.0, %v2462
        %v2464 = vpop.f32.mrb[0].mxu0
        %v2465 = vadd.f32 0.0, %v2464
        %v2466 = vpop.f32.mrb[0].mxu0
        %v2467 = vadd.f32 0.0, %v2466
        %v2468 = vpop.f32.mrb[0].mxu0
        %v2469 = vadd.f32 0.0, %v2468
        %2470 = vmatprep.mubr.bf16.mxu0 %v2423
        %2471 = vmatmul.mubr.bf16.gmra.mrb[0].mxu0 %v2422
        %v2472 = vpop.f32.mrb[0].mxu0
        %v2473 = vadd.f32 0.0, %v2472
        %v2474 = vpop.f32.mrb[0].mxu0
        %v2475 = vadd.f32 0.0, %v2474
        %v2476 = vpop.f32.mrb[0].mxu0
        %v2477 = vadd.f32 0.0, %v2476
        %v2478 = vpop.f32.mrb[0].mxu0
        %v2479 = vadd.f32 0.0, %v2478
        %2480 = vdwg.mxu0
        %v2481 = vmul.f32 %v1980, %v2463
        %v2482 = vmul.f32 %v1984, %v2465
        %v2483 = vmul.f32 %v1980, %v2467
        %v2484 = vmul.f32 %v1984, %v2469
        %v2485 = vmul.f32 %v1980, %v2473
        %v2486 = vmul.f32 %v1984, %v2475
        %v2487 = vmul.f32 %v1980, %v2477
        %v2488 = vmul.f32 %v1984, %v2479
        %v2489 = vadd.f32 %v2396, %v2481
        %v2490 = vadd.f32 %v2397, %v2482
        %v2491 = vadd.f32 %v2398, %v2483
        %v2492 = vadd.f32 %v2399, %v2484
        %v2493 = vadd.f32 %v2400, %v2485
        %v2494 = vadd.f32 %v2401, %v2486
        %v2495 = vadd.f32 %v2402, %v2487
        %v2496 = vadd.f32 %v2403, %v2488
        %v2497 = vmul.f32 %v2489, %v1485
        %v2498 = vmul.f32 %v2490, %v1486
        %v2499 = vmul.f32 %v2491, %v1487
        %v2500 = vmul.f32 %v2492, %v1488
        %v2501 = vmul.f32 %v2493, %v1489
        %v2502 = vmul.f32 %v2494, %v1490
        %v2503 = vmul.f32 %v2495, %v1491
        %v2504 = vmul.f32 %v2496, %v1492
        %v2505 = vadd.f32 %v2497, %v2499
        %v2506 = vadd.f32 %v2505, %v2501
        %v2507 = vadd.f32 %v2506, %v2503
        %v2508 = vrot.slane %v2507, 4
        %v2509 = vadd.f32 %v2507, %v2508
        %v2510 = vrot.slane %v2509, 2
        %v2511 = vadd.f32 %v2509, %v2510
        %v2512 = vrot.slane %v2511, 1
        %v2513 = vadd.f32 %v2511, %v2512
        %v2514 = vadd.f32 %v2498, %v2500
        %v2515 = vadd.f32 %v2514, %v2502
        %v2516 = vadd.f32 %v2515, %v2504
        %v2517 = vrot.slane %v2516, 4
        %v2518 = vadd.f32 %v2516, %v2517
        %v2519 = vrot.slane %v2518, 2
        %v2520 = vadd.f32 %v2518, %v2519
        %v2521 = vrot.slane %v2520, 1
        %v2522 = vadd.f32 %v2520, %v2521
        %vm2523 = vcmask 1040384
        %v2524 = vsel %vm2523, %v2017, %v2513
        %v2525 = vsel %vm2523, %v2026, %v2522
        %v2526 = vmul.f32 %v2524, 0.0125
        %v2527 = vmul.f32 %v2525, 0.0125
        %v2528 = vld [vmem:[%s463] sm:$0xf]
        %v2531 = vunpack.c.l.s4 1983009808
        %v2532 = vunpack.c.0.s8 %v2531
        %v2533 = vlaneseq
        %v2534 = vshrl.u32 %v2533, 7
        %v2535 = vsub.s32 %v2532, %v2534
        %v2536 = vrot.slane %v2528, %v2535
        %v2537 = vcombine.high %v2536, %v2536
        %v2540 = vadd.f32 %v2526, %v2536
        %v2541 = vadd.f32 %v2527, %v2537
        %v2544 = vcombine.low %v2540, %v2541
        %v2546 = vunpack.c.l.s4 1983009808
        %v2547 = vunpack.c.0.s8 %v2546
        %v2548 = vlaneseq
        %v2549 = vshrl.u32 %v2548, 7
        %v2550 = vsub.s32 %v2547, %v2549
        %v2551 = vrot.slane %v2544, %v2550
        %2553 = vst [vmem:[%s451] sm:$0xf] %v2551
        %s2554 = sand.u32 %s283, 1
        %s2555 = scalar_lea.sflag [#allocation4], %s2554
        %s2556 = sand.u32 %s283, 1
        %s2557 = smul.addr %s2556, 4
        %s2558 = scalar_lea.vmem [#allocation7], %s2557
        // Predicated region
        $region73: #{tpu_custom_call.1} parent=63 // pred_check
          %p2559 = pneg %p293
        $region74: #{tpu_custom_call.1} parent=63 // pred_check_branch
          %2561 = sbr.rel (%p2559) target = $region76
        $region75: #{tpu_custom_call.1} parent=63 // pred_region
          %s2562 = smul.u32 2, %s29
          %s2564 = ssub.s32 64, 64
          %2565 = vsyncadd %s2555, %s2564
          %s2566 = smul.addr %s2562, 32
          %s2567 = scalar_lea.hbm %s11, %s2566
          %s2569 = sshll.u32 %s2558, 4
          %s2570 = int_to_ptr.vmem [resolvable:$true] %s2569
          %2572 = dma.vmem_to_hbm [thread:$0]  %s2570, 64, %s2567, %s2555
        $region76: #{tpu_custom_call.1} parent=63 // pred_fallthru
          _
      $region64: #{tpu_custom_call.1} parent=5 // pred_fallthru
        _
      %p2573 = scmp.le.s32.totalorder 2, %s24
      // Predicated region
      $region77: #{tpu_custom_call.1} parent=5 // pred_check
        %p2574 = pneg %p2573
      $region78: #{tpu_custom_call.1} parent=5 // pred_check_branch
        %2576 = sbr.rel (%p2574) target = $region80
      $region79: #{tpu_custom_call.1} parent=5 // pred_region
        %s2577 = ssub.s32 %s24, 2
        // Predicated region
        $region81: #{tpu_custom_call.1} parent=79 // pred_check
          %p2578 = pneg %p299
        $region82: #{tpu_custom_call.1} parent=79 // pred_check_branch
          %2580 = sbr.rel (%p2578) target = $region84
        $region83: #{tpu_custom_call.1} parent=79 // pred_region
          %s2581 = sand.u32 %s284, 1
          %s2582 = scalar_lea.sflag [#allocation4], %s2581
          %s2583 = sand.u32 %s284, 1
          %s2584 = smul.addr %s2583, 4
          %s2585 = scalar_lea.vmem [#allocation7], %s2584
          %2586 = dma.done %s2582, 64
        $region84: #{tpu_custom_call.1} parent=79 // pred_fallthru
          _
      $region80: #{tpu_custom_call.1} parent=5 // pred_fallthru
        _
    $region6: #{tpu_custom_call.1} parent=1 // loop_footer
      %s28 = sadd.s32 1, %s24
    $region7: #{tpu_custom_call.1} parent=1 // loop_footer_branch
      %23 = sbr.rel target = $region3
    $region8: #{tpu_custom_call.1} parent=1 // loop_exit
      _
    %2587 = vsyncpa [#allocation3], 1
    %s2588 = scalar_lea.sflag [#allocation3], 1
    %2589 = vsyncpa %s2588, 1
    %2590 = vsyncpa [#allocation6], 1
    %s2591 = scalar_lea.sflag [#allocation6], 1
    %2592 = vsyncpa %s2591, 1
    %2593 = vsyncpa [#allocation4], 1
    %s2594 = scalar_lea.sflag [#allocation4], 1
    %2595 = vsyncpa %s2594, 1

</llo_original>
